<compile_context>
chip_gen: v7x
topology: tpu7x:2x2x1
jax: 0.10.0
libtpu: 0.0.40
codegen_flags: <defaults>
</compile_context>

<pallas_src>
import functools

import jax
import jax.numpy as jnp
from jax.experimental import pallas as pl
from jax.experimental.pallas import tpu as pltpu

IN_DIM = 28 * 28   # 784
H1 = 512
H2 = 256
OUT_DIM = 10
OUT_PAD = 128      # lane-dense padded logits width; sliced back to 10 in wrapper


def _round_up(x, m):
    return (x + m - 1) // m * m


def _choose_batch_tile(B, batch_tile):
    """Batch tile: multiple of 16 (bf16 output tile), <= batch_tile, and — when
    B is large enough — chosen so the 1-D grid has an even number of steps
    (>= 2) so both v7x TensorCores stay busy."""
    B16 = _round_up(B, 16)
    if B16 <= 16:
        return 16
    steps = max(2, pl.cdiv(B16, batch_tile))
    if steps % 2:
        steps += 1
    return _round_up(pl.cdiv(B16, steps), 16)


def _mlp_kernel(x_ref, w1_ref, b1_ref, w2_ref, b2_ref, w3_ref, b3_ref, out_ref):
    # Fused 3-layer MLP on one (batch_tile, feature) slab.
    # x arrives as f32 (single HBM read); cast to bf16 in-kernel (VPU) so the
    # MXU sees its native dtype. Accumulation in f32, biases f32, store bf16.
    x = x_ref[...].astype(jnp.bfloat16)                                     # (bt, 784)
    h1 = jnp.dot(x, w1_ref[...], preferred_element_type=jnp.float32) + b1_ref[...]
    h1 = jnp.maximum(h1, 0.0).astype(jnp.bfloat16)                          # (bt, 512)
    h2 = jnp.dot(h1, w2_ref[...], preferred_element_type=jnp.float32) + b2_ref[...]
    h2 = jnp.maximum(h2, 0.0).astype(jnp.bfloat16)                          # (bt, 256)
    logits = jnp.dot(h2, w3_ref[...], preferred_element_type=jnp.float32) + b3_ref[...]
    out_ref[...] = logits.astype(out_ref.dtype)                             # (bt, 128) bf16


@functools.partial(jax.jit, static_argnames=("batch_tile",))
def fashion_mnist_nn(x_nchw, params, batch_tile=512):
    """Forward pass matching FashionMNISTNN.forward.

    x_nchw: (B, 1, 28, 28) float32 (PyTorch NCHW convention)
    params: dict with w1 (784,512), b1 (512,), w2 (512,256), b2 (256,),
            w3 (256,10), b3 (10,)  -- weights stored input-major (in, out).
            (Real PyTorch nn.Linear weights are (out, in): transpose on load.)
    returns: (B, 10) float32 logits

    Precision contract: weights/activations in bf16, accumulation in f32,
    logits round-tripped through bf16 (intentional; matches MXU-native dtype).
    """
    B = x_nchw.shape[0]
    x_flat = x_nchw.reshape(B, -1).astype(jnp.float32)   # nn.Flatten (no cast pass)

    bt = _choose_batch_tile(B, batch_tile)
    Bp = _round_up(B, bt)
    if Bp != B:
        x_flat = jnp.pad(x_flat, ((0, Bp - B), (0, 0)))

    w1 = params["w1"].astype(jnp.bfloat16)
    b1 = params["b1"].reshape(1, H1).astype(jnp.float32)
    w2 = params["w2"].astype(jnp.bfloat16)
    b2 = params["b2"].reshape(1, H2).astype(jnp.float32)
    # Pad final layer to 128 output lanes so the kernel's store is unmasked;
    # padded columns are zero and dropped in the slice below.
    w3 = jnp.pad(params["w3"].astype(jnp.bfloat16),
                 ((0, 0), (0, OUT_PAD - OUT_DIM)))
    b3 = jnp.pad(params["b3"].reshape(1, OUT_DIM).astype(jnp.float32),
                 ((0, 0), (0, OUT_PAD - OUT_DIM)))

    grid = (Bp // bt,)

    flops = 2 * Bp * (IN_DIM * H1 + H1 * H2 + H2 * OUT_PAD)
    bytes_accessed = (
        Bp * IN_DIM * 4                                        # x (f32) read
        + (IN_DIM * H1 + H1 * H2 + H2 * OUT_PAD) * 2           # bf16 weights
        + (H1 + H2 + OUT_PAD) * 4                              # f32 biases
        + Bp * OUT_PAD * 2                                     # bf16 logits store
    )

    out = pl.pallas_call(
        _mlp_kernel,
        out_shape=jax.ShapeDtypeStruct((Bp, OUT_PAD), jnp.bfloat16),
        grid_spec=pl.GridSpec(
            grid=grid,
            in_specs=[
                pl.BlockSpec((bt, IN_DIM), lambda i: (i, 0)),    # x tile (pipelined, f32)
                pl.BlockSpec((IN_DIM, H1), lambda i: (0, 0)),    # w1 (resident)
                pl.BlockSpec((1, H1), lambda i: (0, 0)),         # b1
                pl.BlockSpec((H1, H2), lambda i: (0, 0)),        # w2
                pl.BlockSpec((1, H2), lambda i: (0, 0)),         # b2
                pl.BlockSpec((H2, OUT_PAD), lambda i: (0, 0)),   # w3 (lane-padded)
                pl.BlockSpec((1, OUT_PAD), lambda i: (0, 0)),    # b3
            ],
            out_specs=pl.BlockSpec((bt, OUT_PAD), lambda i: (i, 0)),
        ),
        compiler_params=pltpu.CompilerParams(
            dimension_semantics=("parallel",),
            vmem_limit_bytes=32 * 1024 * 1024,
        ),
        cost_estimate=pl.CostEstimate(
            flops=int(flops), transcendentals=0, bytes_accessed=int(bytes_accessed)),
    )(x_flat, w1, b1, w2, b2, w3, b3)

    # Padded rows (>= B) hold b3, padded lanes (>= 10) hold 0 — both dropped here.
    return out[:B, :OUT_DIM].astype(jnp.float32)


def init_params(key):
    """Deterministic synthetic parameters with the same shapes as the module.

    PyTorch nn.Linear stores weight as (out, in) and computes x @ W.T + b;
    here we generate the transposed (in, out) layout directly (equivalent
    semantics for synthetic weights). Real checkpoints must be transposed.
    """
    k1, k2, k3, k4, k5, k6 = jax.random.split(key, 6)
    s1 = 1.0 / jnp.sqrt(IN_DIM)
    s2 = 1.0 / jnp.sqrt(H1)
    s3 = 1.0 / jnp.sqrt(H2)
    return {
        "w1": jax.random.uniform(k1, (IN_DIM, H1), jnp.float32, -s1, s1),
        "b1": jax.random.uniform(k2, (H1,), jnp.float32, -s1, s1),
        "w2": jax.random.uniform(k3, (H1, H2), jnp.float32, -s2, s2),
        "b2": jax.random.uniform(k4, (H2,), jnp.float32, -s2, s2),
        "w3": jax.random.uniform(k5, (H2, OUT_DIM), jnp.float32, -s3, s3),
        "b3": jax.random.uniform(k6, (OUT_DIM,), jnp.float32, -s3, s3),
    }


def _reference(x_nchw, params):
    # Same numerics as the kernel: bf16 operands, f32 accumulation, f32 biases.
    x = x_nchw.reshape(x_nchw.shape[0], -1).astype(jnp.bfloat16)
    w1 = params["w1"].astype(jnp.bfloat16)
    w2 = params["w2"].astype(jnp.bfloat16)
    w3 = params["w3"].astype(jnp.bfloat16)
    h1 = jnp.maximum(
        jnp.dot(x, w1, preferred_element_type=jnp.float32) + params["b1"], 0.0
    ).astype(jnp.bfloat16)
    h2 = jnp.maximum(
        jnp.dot(h1, w2, preferred_element_type=jnp.float32) + params["b2"], 0.0
    ).astype(jnp.bfloat16)
    return jnp.dot(h2, w3, preferred_element_type=jnp.float32) + params["b3"]


if __name__ == "__main__":
    key = jax.random.PRNGKey(0)
    kx, kp = jax.random.split(key)

    B = 2
    x = jax.random.normal(kx, (B, 1, 28, 28), dtype=jnp.float32)  # NCHW like torch
    params = init_params(kp)

    logits = fashion_mnist_nn(x, params)
    logits = jax.block_until_ready(logits)

    ref = _reference(x, params)
    assert logits.shape == (B, OUT_DIM)
    assert logits.dtype == jnp.float32
    assert jnp.allclose(logits, ref, atol=1e-2, rtol=1e-2), "mismatch vs JAX reference"

    print("KERNEL_OK")
</pallas_src>

<mosaic_0001>
module attributes {stable_mosaic.version = 11 : i64} {
  func.func @_mlp_kernel(%arg0: i32, %arg1: memref<16x784xf32, #tpu.memory_space<vmem>>, %arg2: memref<784x512xbf16, #tpu.memory_space<vmem>>, %arg3: memref<1x512xf32, #tpu.memory_space<vmem>>, %arg4: memref<512x256xbf16, #tpu.memory_space<vmem>>, %arg5: memref<1x256xf32, #tpu.memory_space<vmem>>, %arg6: memref<256x128xbf16, #tpu.memory_space<vmem>>, %arg7: memref<1x128xf32, #tpu.memory_space<vmem>>, %arg8: memref<16x128xbf16, #tpu.memory_space<vmem>>) attributes {dimension_semantics = [#tpu.dimension_semantics<parallel>], iteration_bounds = array<i64: 1>, scalar_prefetch = 0 : i64, scratch_operands = 0 : i64, tpu.core_type = #tpu.core_type<tc>, window_params = [{transform_indices = @transform_0, window_bounds = array<i64: 16, 784>}, {pipeline_mode = #tpu.pipeline_mode<synchronous>, transform_indices = @transform_1, window_bounds = array<i64: 784, 512>}, {pipeline_mode = #tpu.pipeline_mode<synchronous>, transform_indices = @transform_2, window_bounds = array<i64: 1, 512>}, {pipeline_mode = #tpu.pipeline_mode<synchronous>, transform_indices = @transform_3, window_bounds = array<i64: 512, 256>}, {pipeline_mode = #tpu.pipeline_mode<synchronous>, transform_indices = @transform_4, window_bounds = array<i64: 1, 256>}, {pipeline_mode = #tpu.pipeline_mode<synchronous>, transform_indices = @transform_5, window_bounds = array<i64: 256, 128>}, {pipeline_mode = #tpu.pipeline_mode<synchronous>, transform_indices = @transform_6, window_bounds = array<i64: 1, 128>}, {transform_indices = @transform_7, window_bounds = array<i64: 16, 128>}]} {
    %c0 = arith.constant 0 : index
    %c0_0 = arith.constant 0 : index
    %0 = vector.load %arg1[%c0, %c0_0] : memref<16x784xf32, #tpu.memory_space<vmem>>, vector<16x784xf32>
    %1 = arith.truncf %0 : vector<16x784xf32> to vector<16x784xbf16>
    %c0_1 = arith.constant 0 : index
    %c0_2 = arith.constant 0 : index
    %2 = vector.load %arg2[%c0_1, %c0_2] : memref<784x512xbf16, #tpu.memory_space<vmem>>, vector<784x512xbf16>
    %cst = arith.constant dense<0.000000e+00> : vector<16x512xf32>
    %3 = tpu.matmul %1, %2, %cst {dimension_numbers = #tpu.dot_dimension_numbers<[1], [0], [0], [1], [0, 0, 1, 1], [], []>} : vector<16x784xbf16>, vector<784x512xbf16>, vector<16x512xf32> -> vector<16x512xf32>
    %c0_3 = arith.constant 0 : index
    %c0_4 = arith.constant 0 : index
    %4 = vector.load %arg3[%c0_3, %c0_4] : memref<1x512xf32, #tpu.memory_space<vmem>>, vector<1x512xf32>
    %5 = vector.broadcast %4 : vector<1x512xf32> to vector<16x512xf32>
    %6 = arith.addf %3, %5 : vector<16x512xf32>
    %cst_5 = arith.constant 0.000000e+00 : f32
    %7 = vector.broadcast %cst_5 : f32 to vector<16x512xf32>
    %8 = arith.maximumf %6, %7 : vector<16x512xf32>
    %9 = arith.truncf %8 : vector<16x512xf32> to vector<16x512xbf16>
    %c0_6 = arith.constant 0 : index
    %c0_7 = arith.constant 0 : index
    %10 = vector.load %arg4[%c0_6, %c0_7] : memref<512x256xbf16, #tpu.memory_space<vmem>>, vector<512x256xbf16>
    %cst_8 = arith.constant dense<0.000000e+00> : vector<16x256xf32>
    %11 = tpu.matmul %9, %10, %cst_8 {dimension_numbers = #tpu.dot_dimension_numbers<[1], [0], [0], [1], [0, 0, 1, 1], [], []>} : vector<16x512xbf16>, vector<512x256xbf16>, vector<16x256xf32> -> vector<16x256xf32>
    %c0_9 = arith.constant 0 : index
    %c0_10 = arith.constant 0 : index
    %12 = vector.load %arg5[%c0_9, %c0_10] : memref<1x256xf32, #tpu.memory_space<vmem>>, vector<1x256xf32>
    %13 = vector.broadcast %12 : vector<1x256xf32> to vector<16x256xf32>
    %14 = arith.addf %11, %13 : vector<16x256xf32>
    %cst_11 = arith.constant 0.000000e+00 : f32
    %15 = vector.broadcast %cst_11 : f32 to vector<16x256xf32>
    %16 = arith.maximumf %14, %15 : vector<16x256xf32>
    %17 = arith.truncf %16 : vector<16x256xf32> to vector<16x256xbf16>
    %c0_12 = arith.constant 0 : index
    %c0_13 = arith.constant 0 : index
    %18 = vector.load %arg6[%c0_12, %c0_13] : memref<256x128xbf16, #tpu.memory_space<vmem>>, vector<256x128xbf16>
    %cst_14 = arith.constant dense<0.000000e+00> : vector<16x128xf32>
    %19 = tpu.matmul %17, %18, %cst_14 {dimension_numbers = #tpu.dot_dimension_numbers<[1], [0], [0], [1], [0, 0, 1, 1], [], []>} : vector<16x256xbf16>, vector<256x128xbf16>, vector<16x128xf32> -> vector<16x128xf32>
    %c0_15 = arith.constant 0 : index
    %c0_16 = arith.constant 0 : index
    %20 = vector.load %arg7[%c0_15, %c0_16] : memref<1x128xf32, #tpu.memory_space<vmem>>, vector<1x128xf32>
    %21 = vector.broadcast %20 : vector<1x128xf32> to vector<16x128xf32>
    %22 = arith.addf %19, %21 : vector<16x128xf32>
    %23 = arith.truncf %22 : vector<16x128xf32> to vector<16x128xbf16>
    %c0_17 = arith.constant 0 : index
    %c0_18 = arith.constant 0 : index
    %24 = vector.load %arg8[%c0_17, %c0_18] : memref<16x128xbf16, #tpu.memory_space<vmem>>, vector<16x128xbf16>
    tpu.vector_store %arg8[%c0_17, %c0_18], %23 {strides = array<i32>} : memref<16x128xbf16, #tpu.memory_space<vmem>>, vector<16x128xbf16>,
    return
  }
  func.func @transform_0(%arg0: i32) -> (i32, i32) {
    %c0_i32 = arith.constant 0 : i32
    %c0_i32_0 = arith.constant 0 : i32
    return %arg0, %c0_i32 : i32, i32
  }
  func.func @transform_1(%arg0: i32) -> (i32, i32) {
    %c0_i32 = arith.constant 0 : i32
    %c0_i32_0 = arith.constant 0 : i32
    %c0_i32_1 = arith.constant 0 : i32
    return %c0_i32, %c0_i32_0 : i32, i32
  }
  func.func @transform_2(%arg0: i32) -> (i32, i32) {
    %c0_i32 = arith.constant 0 : i32
    %c0_i32_0 = arith.constant 0 : i32
    %c0_i32_1 = arith.constant 0 : i32
    return %c0_i32, %c0_i32_0 : i32, i32
  }
  func.func @transform_3(%arg0: i32) -> (i32, i32) {
    %c0_i32 = arith.constant 0 : i32
    %c0_i32_0 = arith.constant 0 : i32
    %c0_i32_1 = arith.constant 0 : i32
    return %c0_i32, %c0_i32_0 : i32, i32
  }
  func.func @transform_4(%arg0: i32) -> (i32, i32) {
    %c0_i32 = arith.constant 0 : i32
    %c0_i32_0 = arith.constant 0 : i32
    %c0_i32_1 = arith.constant 0 : i32
    return %c0_i32, %c0_i32_0 : i32, i32
  }
  func.func @transform_5(%arg0: i32) -> (i32, i32) {
    %c0_i32 = arith.constant 0 : i32
    %c0_i32_0 = arith.constant 0 : i32
    %c0_i32_1 = arith.constant 0 : i32
    return %c0_i32, %c0_i32_0 : i32, i32
  }
  func.func @transform_6(%arg0: i32) -> (i32, i32) {
    %c0_i32 = arith.constant 0 : i32
    %c0_i32_0 = arith.constant 0 : i32
    %c0_i32_1 = arith.constant 0 : i32
    return %c0_i32, %c0_i32_0 : i32, i32
  }
  func.func @transform_7(%arg0: i32) -> (i32, i32) {
    %c0_i32 = arith.constant 0 : i32
    %c0_i32_0 = arith.constant 0 : i32
    return %arg0, %c0_i32 : i32, i32
  }
}

</mosaic_0001>

<llo_original>
// kernel: fashion_mnist_nn.1
$region0: #{fashion_mnist_nn.1}
  #allocation0 [shape = 'u32[]', space=smem, size = 0x4, offset = 0x4, fixed_abs, tag = 'smem constant byte address 0x4 - core index']
  #allocation1 [shape = 'u32[144,128]{1,0:T(1,128)}', space=vmem, size = 0x12000, scoped, tag = 'internal scratch']
  %s0 = inlined_call_operand.vmem [shape: f32[16,784], index: 0, kind: input, shape index: {}]
  %s1 = inlined_call_operand.vmem [shape: bf16[784,512], index: 1, kind: input, shape index: {}]
  %s2 = inlined_call_operand.vmem [shape: f32[1,512], index: 2, kind: input, shape index: {}]
  %s3 = inlined_call_operand.vmem [shape: bf16[512,256], index: 3, kind: input, shape index: {}]
  %s4 = inlined_call_operand.vmem [shape: f32[1,256], index: 4, kind: input, shape index: {}]
  %s5 = inlined_call_operand.vmem [shape: bf16[256,128], index: 5, kind: input, shape index: {}]
  %s6 = inlined_call_operand.vmem [shape: f32[1,128], index: 6, kind: input, shape index: {}]
  %s7 = inlined_call_operand.vmem [shape: bf16[16,128], index: 7, kind: output, shape index: {}]
  %s8 = sld [smem:[#allocation0]]
  $region38: #{fashion_mnist_nn.1} parent=0
    _
  %s10 = ssub.s32 1, %s8
  %s11 = scalar_select 0, %s10, %s8
  // Predicated region
  $region2: #{fashion_mnist_nn.1} parent=0 // pred_check
    _
  $region3: #{fashion_mnist_nn.1} parent=0 // pred_check_branch
    %13 = sbr.rel (0) target = $region5
  $region4: #{fashion_mnist_nn.1} parent=0 // pred_region
    _
  $region5: #{fashion_mnist_nn.1} parent=0 // pred_fallthru
    _
  // Predicated region
  $region6: #{fashion_mnist_nn.1} parent=0 // pred_check
    _
  $region7: #{fashion_mnist_nn.1} parent=0 // pred_check_branch
    %15 = sbr.rel (0) target = $region9
  $region8: #{fashion_mnist_nn.1} parent=0 // pred_region
    _
  $region9: #{fashion_mnist_nn.1} parent=0 // pred_fallthru
    _
  // Predicated region
  $region10: #{fashion_mnist_nn.1} parent=0 // pred_check
    _
  $region11: #{fashion_mnist_nn.1} parent=0 // pred_check_branch
    %17 = sbr.rel (0) target = $region13
  $region12: #{fashion_mnist_nn.1} parent=0 // pred_region
    _
  $region13: #{fashion_mnist_nn.1} parent=0 // pred_fallthru
    _
  // Predicated region
  $region14: #{fashion_mnist_nn.1} parent=0 // pred_check
    _
  $region15: #{fashion_mnist_nn.1} parent=0 // pred_check_branch
    %19 = sbr.rel (0) target = $region17
  $region16: #{fashion_mnist_nn.1} parent=0 // pred_region
    _
  $region17: #{fashion_mnist_nn.1} parent=0 // pred_fallthru
    _
  // Predicated region
  $region18: #{fashion_mnist_nn.1} parent=0 // pred_check
    _
  $region19: #{fashion_mnist_nn.1} parent=0 // pred_check_branch
    %21 = sbr.rel (0) target = $region21
  $region20: #{fashion_mnist_nn.1} parent=0 // pred_region
    _
  $region21: #{fashion_mnist_nn.1} parent=0 // pred_fallthru
    _
  // Predicated region
  $region22: #{fashion_mnist_nn.1} parent=0 // pred_check
    _
  $region23: #{fashion_mnist_nn.1} parent=0 // pred_check_branch
    %23 = sbr.rel (0) target = $region25
  $region24: #{fashion_mnist_nn.1} parent=0 // pred_region
    _
  $region25: #{fashion_mnist_nn.1} parent=0 // pred_fallthru
    _
  // Predicated region
  $region26: #{fashion_mnist_nn.1} parent=0 // pred_check
    _
  $region27: #{fashion_mnist_nn.1} parent=0 // pred_check_branch
    %25 = sbr.rel (0) target = $region29
  $region28: #{fashion_mnist_nn.1} parent=0 // pred_region
    _
  $region29: #{fashion_mnist_nn.1} parent=0 // pred_fallthru
    _
  %v27 = vld [vmem:[%s0] sm:$0xff]
  %v28 = vld [vmem:[%s0 + $0x8] sm:$0xff]
  %v29 = vld [vmem:[%s0 + $0x10] sm:$0xff]
  %v30 = vld [vmem:[%s0 + $0x18] sm:$0xff]
  %v31 = vld [vmem:[%s0 + $0x20] sm:$0xff]
  %v32 = vld [vmem:[%s0 + $0x28] sm:$0xff]
  %v33 = vld [vmem:[%s0 + $0x30] sm:$0xff]
  %v34 = vld [vmem:[%s0 + $0x38] sm:$0xff]
  %v35 = vld [vmem:[%s0 + $0x40] sm:$0xff]
  %v36 = vld [vmem:[%s0 + $0x48] sm:$0xff]
  %v37 = vld [vmem:[%s0 + $0x50] sm:$0xff]
  %v38 = vld [vmem:[%s0 + $0x58] sm:$0xff]
  %v39 = vld [vmem:[%s0 + $0x60] sm:$0xff]
  %v40 = vld [vmem:[%s0 + $0x68] sm:$0xff]
  %v41 = vpack.c.bf16 %v34, %v27
  %v42 = vpack.c.bf16 %v35, %v28
  %v43 = vpack.c.bf16 %v36, %v29
  %v44 = vpack.c.bf16 %v37, %v30
  %v45 = vpack.c.bf16 %v38, %v31
  %v46 = vpack.c.bf16 %v39, %v32
  %v47 = vpack.c.bf16 %v40, %v33
  %v48 = vld [vmem:[%s1] sm:$0xff]
  %v49 = vld [vmem:[%s1 + $0x8] sm:$0xff]
  %v50 = vld [vmem:[%s1 + $0x10] sm:$0xff]
  %v51 = vld [vmem:[%s1 + $0x18] sm:$0xff]
  %v52 = vld [vmem:[%s1 + $0x20] sm:$0xff]
  %v53 = vld [vmem:[%s1 + $0x28] sm:$0xff]
  %v54 = vld [vmem:[%s1 + $0x30] sm:$0xff]
  %v55 = vld [vmem:[%s1 + $0x38] sm:$0xff]
  %v56 = vld [vmem:[%s1 + $0x40] sm:$0xff]
  %v57 = vld [vmem:[%s1 + $0x48] sm:$0xff]
  %v58 = vld [vmem:[%s1 + $0x50] sm:$0xff]
  %v59 = vld [vmem:[%s1 + $0x58] sm:$0xff]
  %v60 = vld [vmem:[%s1 + $0x60] sm:$0xff]
  %v61 = vld [vmem:[%s1 + $0x68] sm:$0xff]
  %v62 = vld [vmem:[%s1 + $0x70] sm:$0xff]
  %v63 = vld [vmem:[%s1 + $0x78] sm:$0xff]
  %v64 = vld [vmem:[%s1 + $0x80] sm:$0xff]
  %v65 = vld [vmem:[%s1 + $0x88] sm:$0xff]
  %v66 = vld [vmem:[%s1 + $0x90] sm:$0xff]
  %v67 = vld [vmem:[%s1 + $0x98] sm:$0xff]
  %v68 = vld [vmem:[%s1 + $0xa0] sm:$0xff]
  %v69 = vld [vmem:[%s1 + $0xa8] sm:$0xff]
  %v70 = vld [vmem:[%s1 + $0xb0] sm:$0xff]
  %v71 = vld [vmem:[%s1 + $0xb8] sm:$0xff]
  %v72 = vld [vmem:[%s1 + $0xc0] sm:$0xff]
  %v73 = vld [vmem:[%s1 + $0xc8] sm:$0xff]
  %v74 = vld [vmem:[%s1 + $0xd0] sm:$0xff]
  %v75 = vld [vmem:[%s1 + $0xd8] sm:$0xff]
  %v76 = vld [vmem:[%s1 + $0xe0] sm:$0xff]
  %v77 = vld [vmem:[%s1 + $0xe8] sm:$0xff]
  %v78 = vld [vmem:[%s1 + $0xf0] sm:$0xff]
  %v79 = vld [vmem:[%s1 + $0xf8] sm:$0xff]
  %v80 = vld [vmem:[%s1 + $0x100] sm:$0xff]
  %v81 = vld [vmem:[%s1 + $0x108] sm:$0xff]
  %v82 = vld [vmem:[%s1 + $0x110] sm:$0xff]
  %v83 = vld [vmem:[%s1 + $0x118] sm:$0xff]
  %v84 = vld [vmem:[%s1 + $0x120] sm:$0xff]
  %v85 = vld [vmem:[%s1 + $0x128] sm:$0xff]
  %v86 = vld [vmem:[%s1 + $0x130] sm:$0xff]
  %v87 = vld [vmem:[%s1 + $0x138] sm:$0xff]
  %v88 = vld [vmem:[%s1 + $0x140] sm:$0xff]
  %v89 = vld [vmem:[%s1 + $0x148] sm:$0xff]
  %v90 = vld [vmem:[%s1 + $0x150] sm:$0xff]
  %v91 = vld [vmem:[%s1 + $0x158] sm:$0xff]
  %v92 = vld [vmem:[%s1 + $0x160] sm:$0xff]
  %v93 = vld [vmem:[%s1 + $0x168] sm:$0xff]
  %v94 = vld [vmem:[%s1 + $0x170] sm:$0xff]
  %v95 = vld [vmem:[%s1 + $0x178] sm:$0xff]
  %v96 = vld [vmem:[%s1 + $0x180] sm:$0xff]
  %v97 = vld [vmem:[%s1 + $0x188] sm:$0xff]
  %v98 = vld [vmem:[%s1 + $0x190] sm:$0xff]
  %v99 = vld [vmem:[%s1 + $0x198] sm:$0xff]
  %v100 = vld [vmem:[%s1 + $0x1a0] sm:$0xff]
  %v101 = vld [vmem:[%s1 + $0x1a8] sm:$0xff]
  %v102 = vld [vmem:[%s1 + $0x1b0] sm:$0xff]
  %v103 = vld [vmem:[%s1 + $0x1b8] sm:$0xff]
  %v104 = vld [vmem:[%s1 + $0x1c0] sm:$0xff]
  %v105 = vld [vmem:[%s1 + $0x1c8] sm:$0xff]
  %v106 = vld [vmem:[%s1 + $0x1d0] sm:$0xff]
  %v107 = vld [vmem:[%s1 + $0x1d8] sm:$0xff]
  %v108 = vld [vmem:[%s1 + $0x1e0] sm:$0xff]
  %v109 = vld [vmem:[%s1 + $0x1e8] sm:$0xff]
  %v110 = vld [vmem:[%s1 + $0x1f0] sm:$0xff]
  %v111 = vld [vmem:[%s1 + $0x1f8] sm:$0xff]
  %v112 = vld [vmem:[%s1 + $0x200] sm:$0xff]
  %v113 = vld [vmem:[%s1 + $0x208] sm:$0xff]
  %v114 = vld [vmem:[%s1 + $0x210] sm:$0xff]
  %v115 = vld [vmem:[%s1 + $0x218] sm:$0xff]
  %v116 = vld [vmem:[%s1 + $0x220] sm:$0xff]
  %v117 = vld [vmem:[%s1 + $0x228] sm:$0xff]
  %v118 = vld [vmem:[%s1 + $0x230] sm:$0xff]
  %v119 = vld [vmem:[%s1 + $0x238] sm:$0xff]
  %v120 = vld [vmem:[%s1 + $0x240] sm:$0xff]
  %v121 = vld [vmem:[%s1 + $0x248] sm:$0xff]
  %v122 = vld [vmem:[%s1 + $0x250] sm:$0xff]
  %v123 = vld [vmem:[%s1 + $0x258] sm:$0xff]
  %v124 = vld [vmem:[%s1 + $0x260] sm:$0xff]
  %v125 = vld [vmem:[%s1 + $0x268] sm:$0xff]
  %v126 = vld [vmem:[%s1 + $0x270] sm:$0xff]
  %v127 = vld [vmem:[%s1 + $0x278] sm:$0xff]
  %v128 = vld [vmem:[%s1 + $0x280] sm:$0xff]
  %v129 = vld [vmem:[%s1 + $0x288] sm:$0xff]
  %v130 = vld [vmem:[%s1 + $0x290] sm:$0xff]
  %v131 = vld [vmem:[%s1 + $0x298] sm:$0xff]
  %v132 = vld [vmem:[%s1 + $0x2a0] sm:$0xff]
  %v133 = vld [vmem:[%s1 + $0x2a8] sm:$0xff]
  %v134 = vld [vmem:[%s1 + $0x2b0] sm:$0xff]
  %v135 = vld [vmem:[%s1 + $0x2b8] sm:$0xff]
  %v136 = vld [vmem:[%s1 + $0x2c0] sm:$0xff]
  %v137 = vld [vmem:[%s1 + $0x2c8] sm:$0xff]
  %v138 = vld [vmem:[%s1 + $0x2d0] sm:$0xff]
  %v139 = vld [vmem:[%s1 + $0x2d8] sm:$0xff]
  %v140 = vld [vmem:[%s1 + $0x2e0] sm:$0xff]
  %v141 = vld [vmem:[%s1 + $0x2e8] sm:$0xff]
  %v142 = vld [vmem:[%s1 + $0x2f0] sm:$0xff]
  %v143 = vld [vmem:[%s1 + $0x2f8] sm:$0xff]
  %v144 = vld [vmem:[%s1 + $0x300] sm:$0xff]
  %v145 = vld [vmem:[%s1 + $0x308] sm:$0xff]
  %v146 = vld [vmem:[%s1 + $0x310] sm:$0xff]
  %v147 = vld [vmem:[%s1 + $0x318] sm:$0xff]
  %v148 = vld [vmem:[%s1 + $0x320] sm:$0xff]
  %v149 = vld [vmem:[%s1 + $0x328] sm:$0xff]
  %v150 = vld [vmem:[%s1 + $0x330] sm:$0xff]
  %v151 = vld [vmem:[%s1 + $0x338] sm:$0xff]
  %v152 = vld [vmem:[%s1 + $0x340] sm:$0xff]
  %v153 = vld [vmem:[%s1 + $0x348] sm:$0xff]
  %v154 = vld [vmem:[%s1 + $0x350] sm:$0xff]
  %v155 = vld [vmem:[%s1 + $0x358] sm:$0xff]
  %v156 = vld [vmem:[%s1 + $0x360] sm:$0xff]
  %v157 = vld [vmem:[%s1 + $0x368] sm:$0xff]
  %v158 = vld [vmem:[%s1 + $0x370] sm:$0xff]
  %v159 = vld [vmem:[%s1 + $0x378] sm:$0xff]
  %v160 = vld [vmem:[%s1 + $0x380] sm:$0xff]
  %v161 = vld [vmem:[%s1 + $0x388] sm:$0xff]
  %v162 = vld [vmem:[%s1 + $0x390] sm:$0xff]
  %v163 = vld [vmem:[%s1 + $0x398] sm:$0xff]
  %v164 = vld [vmem:[%s1 + $0x3a0] sm:$0xff]
  %v165 = vld [vmem:[%s1 + $0x3a8] sm:$0xff]
  %v166 = vld [vmem:[%s1 + $0x3b0] sm:$0xff]
  %v167 = vld [vmem:[%s1 + $0x3b8] sm:$0xff]
  %v168 = vld [vmem:[%s1 + $0x3c0] sm:$0xff]
  %v169 = vld [vmem:[%s1 + $0x3c8] sm:$0xff]
  %v170 = vld [vmem:[%s1 + $0x3d0] sm:$0xff]
  %v171 = vld [vmem:[%s1 + $0x3d8] sm:$0xff]
  %v172 = vld [vmem:[%s1 + $0x3e0] sm:$0xff]
  %v173 = vld [vmem:[%s1 + $0x3e8] sm:$0xff]
  %v174 = vld [vmem:[%s1 + $0x3f0] sm:$0xff]
  %v175 = vld [vmem:[%s1 + $0x3f8] sm:$0xff]
  %v176 = vld [vmem:[%s1 + $0x400] sm:$0xff]
  %v177 = vld [vmem:[%s1 + $0x408] sm:$0xff]
  %v178 = vld [vmem:[%s1 + $0x410] sm:$0xff]
  %v179 = vld [vmem:[%s1 + $0x418] sm:$0xff]
  %v180 = vld [vmem:[%s1 + $0x420] sm:$0xff]
  %v181 = vld [vmem:[%s1 + $0x428] sm:$0xff]
  %v182 = vld [vmem:[%s1 + $0x430] sm:$0xff]
  %v183 = vld [vmem:[%s1 + $0x438] sm:$0xff]
  %v184 = vld [vmem:[%s1 + $0x440] sm:$0xff]
  %v185 = vld [vmem:[%s1 + $0x448] sm:$0xff]
  %v186 = vld [vmem:[%s1 + $0x450] sm:$0xff]
  %v187 = vld [vmem:[%s1 + $0x458] sm:$0xff]
  %v188 = vld [vmem:[%s1 + $0x460] sm:$0xff]
  %v189 = vld [vmem:[%s1 + $0x468] sm:$0xff]
  %v190 = vld [vmem:[%s1 + $0x470] sm:$0xff]
  %v191 = vld [vmem:[%s1 + $0x478] sm:$0xff]
  %v192 = vld [vmem:[%s1 + $0x480] sm:$0xff]
  %v193 = vld [vmem:[%s1 + $0x488] sm:$0xff]
  %v194 = vld [vmem:[%s1 + $0x490] sm:$0xff]
  %v195 = vld [vmem:[%s1 + $0x498] sm:$0xff]
  %v196 = vld [vmem:[%s1 + $0x4a0] sm:$0xff]
  %v197 = vld [vmem:[%s1 + $0x4a8] sm:$0xff]
  %v198 = vld [vmem:[%s1 + $0x4b0] sm:$0xff]
  %v199 = vld [vmem:[%s1 + $0x4b8] sm:$0xff]
  %v200 = vld [vmem:[%s1 + $0x4c0] sm:$0xff]
  %v201 = vld [vmem:[%s1 + $0x4c8] sm:$0xff]
  %v202 = vld [vmem:[%s1 + $0x4d0] sm:$0xff]
  %v203 = vld [vmem:[%s1 + $0x4d8] sm:$0xff]
  %v204 = vld [vmem:[%s1 + $0x4e0] sm:$0xff]
  %v205 = vld [vmem:[%s1 + $0x4e8] sm:$0xff]
  %v206 = vld [vmem:[%s1 + $0x4f0] sm:$0xff]
  %v207 = vld [vmem:[%s1 + $0x4f8] sm:$0xff]
  %v208 = vld [vmem:[%s1 + $0x500] sm:$0xff]
  %v209 = vld [vmem:[%s1 + $0x508] sm:$0xff]
  %v210 = vld [vmem:[%s1 + $0x510] sm:$0xff]
  %v211 = vld [vmem:[%s1 + $0x518] sm:$0xff]
  %v212 = vld [vmem:[%s1 + $0x520] sm:$0xff]
  %v213 = vld [vmem:[%s1 + $0x528] sm:$0xff]
  %v214 = vld [vmem:[%s1 + $0x530] sm:$0xff]
  %v215 = vld [vmem:[%s1 + $0x538] sm:$0xff]
  %v216 = vld [vmem:[%s1 + $0x540] sm:$0xff]
  %v217 = vld [vmem:[%s1 + $0x548] sm:$0xff]
  %v218 = vld [vmem:[%s1 + $0x550] sm:$0xff]
  %v219 = vld [vmem:[%s1 + $0x558] sm:$0xff]
  %v220 = vld [vmem:[%s1 + $0x560] sm:$0xff]
  %v221 = vld [vmem:[%s1 + $0x568] sm:$0xff]
  %v222 = vld [vmem:[%s1 + $0x570] sm:$0xff]
  %v223 = vld [vmem:[%s1 + $0x578] sm:$0xff]
  %v224 = vld [vmem:[%s1 + $0x580] sm:$0xff]
  %v225 = vld [vmem:[%s1 + $0x588] sm:$0xff]
  %v226 = vld [vmem:[%s1 + $0x590] sm:$0xff]
  %v227 = vld [vmem:[%s1 + $0x598] sm:$0xff]
  %v228 = vld [vmem:[%s1 + $0x5a0] sm:$0xff]
  %v229 = vld [vmem:[%s1 + $0x5a8] sm:$0xff]
  %v230 = vld [vmem:[%s1 + $0x5b0] sm:$0xff]
  %v231 = vld [vmem:[%s1 + $0x5b8] sm:$0xff]
  %v232 = vld [vmem:[%s1 + $0x5c0] sm:$0xff]
  %v233 = vld [vmem:[%s1 + $0x5c8] sm:$0xff]
  %v234 = vld [vmem:[%s1 + $0x5d0] sm:$0xff]
  %v235 = vld [vmem:[%s1 + $0x5d8] sm:$0xff]
  %v236 = vld [vmem:[%s1 + $0x5e0] sm:$0xff]
  %v237 = vld [vmem:[%s1 + $0x5e8] sm:$0xff]
  %v238 = vld [vmem:[%s1 + $0x5f0] sm:$0xff]
  %v239 = vld [vmem:[%s1 + $0x5f8] sm:$0xff]
  %v240 = vld [vmem:[%s1 + $0x600] sm:$0xff]
  %v241 = vld [vmem:[%s1 + $0x608] sm:$0xff]
  %v242 = vld [vmem:[%s1 + $0x610] sm:$0xff]
  %v243 = vld [vmem:[%s1 + $0x618] sm:$0xff]
  %v244 = vld [vmem:[%s2] sm:$0xf]
  %v246 = vlaneseq
  %v247 = vshrl.u32 %v246, 7
  %v248 = vsub.s32 0, %v247
  %v249 = vrot.slane %v244, %v248
  %v250 = vlaneseq
  %v251 = vshrl.u32 %v250, 7
  %v252 = vsub.s32 1, %v251
  %v253 = vrot.slane %v244, %v252
  %v254 = vlaneseq
  %v255 = vshrl.u32 %v254, 7
  %v256 = vsub.s32 2, %v255
  %v257 = vrot.slane %v244, %v256
  %v258 = vlaneseq
  %v259 = vshrl.u32 %v258, 7
  %v260 = vsub.s32 3, %v259
  %v261 = vrot.slane %v244, %v260
  %v462 = vunpack.c.l.b16 %v48
  %v463 = vunpack.c.h.b16 %v48
  %v464 = vunpack.c.l.b16 %v49
  %v465 = vunpack.c.h.b16 %v49
  %v466 = vunpack.c.l.b16 %v50
  %v467 = vunpack.c.h.b16 %v50
  %v468 = vunpack.c.l.b16 %v51
  %v469 = vunpack.c.h.b16 %v51
  %v470 = vunpack.c.l.b16 %v52
  %v471 = vunpack.c.h.b16 %v52
  %v472 = vunpack.c.l.b16 %v53
  %v473 = vunpack.c.h.b16 %v53
  %v474 = vunpack.c.l.b16 %v54
  %v475 = vunpack.c.h.b16 %v54
  %v476 = vunpack.c.l.b16 %v55
  %v477 = vunpack.c.h.b16 %v55
  %v478 = vunpack.c.l.b16 %v56
  %v479 = vunpack.c.h.b16 %v56
  %v480 = vunpack.c.l.b16 %v57
  %v481 = vunpack.c.h.b16 %v57
  %v482 = vunpack.c.l.b16 %v58
  %v483 = vunpack.c.h.b16 %v58
  %v484 = vunpack.c.l.b16 %v59
  %v485 = vunpack.c.h.b16 %v59
  %v486 = vunpack.c.l.b16 %v60
  %v487 = vunpack.c.h.b16 %v60
  %v488 = vunpack.c.l.b16 %v61
  %v489 = vunpack.c.h.b16 %v61
  %v490 = vunpack.c.l.b16 %v62
  %v491 = vunpack.c.h.b16 %v62
  %v492 = vunpack.c.l.b16 %v63
  %v493 = vunpack.c.h.b16 %v63
  %v494 = vunpack.c.l.b16 %v64
  %v495 = vunpack.c.h.b16 %v64
  %v496 = vunpack.c.l.b16 %v65
  %v497 = vunpack.c.h.b16 %v65
  %v498 = vunpack.c.l.b16 %v66
  %v499 = vunpack.c.h.b16 %v66
  %v500 = vunpack.c.l.b16 %v67
  %v501 = vunpack.c.h.b16 %v67
  %v502 = vunpack.c.l.b16 %v68
  %v503 = vunpack.c.h.b16 %v68
  %v504 = vunpack.c.l.b16 %v69
  %v505 = vunpack.c.h.b16 %v69
  %v506 = vunpack.c.l.b16 %v70
  %v507 = vunpack.c.h.b16 %v70
  %v508 = vunpack.c.l.b16 %v71
  %v509 = vunpack.c.h.b16 %v71
  %v510 = vunpack.c.l.b16 %v72
  %v511 = vunpack.c.h.b16 %v72
  %v512 = vunpack.c.l.b16 %v73
  %v513 = vunpack.c.h.b16 %v73
  %v514 = vunpack.c.l.b16 %v74
  %v515 = vunpack.c.h.b16 %v74
  %v516 = vunpack.c.l.b16 %v75
  %v517 = vunpack.c.h.b16 %v75
  %v518 = vunpack.c.l.b16 %v76
  %v519 = vunpack.c.h.b16 %v76
  %v520 = vunpack.c.l.b16 %v77
  %v521 = vunpack.c.h.b16 %v77
  %v522 = vunpack.c.l.b16 %v78
  %v523 = vunpack.c.h.b16 %v78
  %v524 = vunpack.c.l.b16 %v79
  %v525 = vunpack.c.h.b16 %v79
  %v526 = vunpack.c.l.b16 %v80
  %v527 = vunpack.c.h.b16 %v80
  %v528 = vunpack.c.l.b16 %v81
  %v529 = vunpack.c.h.b16 %v81
  %v530 = vunpack.c.l.b16 %v82
  %v531 = vunpack.c.h.b16 %v82
  %v532 = vunpack.c.l.b16 %v83
  %v533 = vunpack.c.h.b16 %v83
  %v534 = vunpack.c.l.b16 %v84
  %v535 = vunpack.c.h.b16 %v84
  %v536 = vunpack.c.l.b16 %v85
  %v537 = vunpack.c.h.b16 %v85
  %v538 = vunpack.c.l.b16 %v86
  %v539 = vunpack.c.h.b16 %v86
  %v540 = vunpack.c.l.b16 %v87
  %v541 = vunpack.c.h.b16 %v87
  %v542 = vunpack.c.l.b16 %v88
  %v543 = vunpack.c.h.b16 %v88
  %v544 = vunpack.c.l.b16 %v89
  %v545 = vunpack.c.h.b16 %v89
  %v546 = vunpack.c.l.b16 %v90
  %v547 = vunpack.c.h.b16 %v90
  %v548 = vunpack.c.l.b16 %v91
  %v549 = vunpack.c.h.b16 %v91
  %v550 = vunpack.c.l.b16 %v92
  %v551 = vunpack.c.h.b16 %v92
  %v552 = vunpack.c.l.b16 %v93
  %v553 = vunpack.c.h.b16 %v93
  %v554 = vunpack.c.l.b16 %v94
  %v555 = vunpack.c.h.b16 %v94
  %v556 = vunpack.c.l.b16 %v95
  %v557 = vunpack.c.h.b16 %v95
  %v558 = vunpack.c.l.b16 %v96
  %v559 = vunpack.c.h.b16 %v96
  %v560 = vunpack.c.l.b16 %v97
  %v561 = vunpack.c.h.b16 %v97
  %v562 = vunpack.c.l.b16 %v98
  %v563 = vunpack.c.h.b16 %v98
  %v564 = vunpack.c.l.b16 %v99
  %v565 = vunpack.c.h.b16 %v99
  %v566 = vunpack.c.l.b16 %v100
  %v567 = vunpack.c.h.b16 %v100
  %v568 = vunpack.c.l.b16 %v101
  %v569 = vunpack.c.h.b16 %v101
  %v570 = vunpack.c.l.b16 %v102
  %v571 = vunpack.c.h.b16 %v102
  %v572 = vunpack.c.l.b16 %v103
  %v573 = vunpack.c.h.b16 %v103
  %v574 = vunpack.c.l.b16 %v104
  %v575 = vunpack.c.h.b16 %v104
  %v576 = vunpack.c.l.b16 %v105
  %v577 = vunpack.c.h.b16 %v105
  %v578 = vunpack.c.l.b16 %v106
  %v579 = vunpack.c.h.b16 %v106
  %v580 = vunpack.c.l.b16 %v107
  %v581 = vunpack.c.h.b16 %v107
  %v582 = vunpack.c.l.b16 %v108
  %v583 = vunpack.c.h.b16 %v108
  %v584 = vunpack.c.l.b16 %v109
  %v585 = vunpack.c.h.b16 %v109
  %v586 = vunpack.c.l.b16 %v110
  %v587 = vunpack.c.h.b16 %v110
  %v588 = vunpack.c.l.b16 %v111
  %v589 = vunpack.c.h.b16 %v111
  %v590 = vunpack.c.l.b16 %v112
  %v591 = vunpack.c.h.b16 %v112
  %v592 = vunpack.c.l.b16 %v113
  %v593 = vunpack.c.h.b16 %v113
  %v594 = vunpack.c.l.b16 %v114
  %v595 = vunpack.c.h.b16 %v114
  %v596 = vunpack.c.l.b16 %v115
  %v597 = vunpack.c.h.b16 %v115
  %v598 = vunpack.c.l.b16 %v116
  %v599 = vunpack.c.h.b16 %v116
  %v600 = vunpack.c.l.b16 %v117
  %v601 = vunpack.c.h.b16 %v117
  %v602 = vunpack.c.l.b16 %v118
  %v603 = vunpack.c.h.b16 %v118
  %v604 = vunpack.c.l.b16 %v119
  %v605 = vunpack.c.h.b16 %v119
  %v606 = vunpack.c.l.b16 %v120
  %v607 = vunpack.c.h.b16 %v120
  %v608 = vunpack.c.l.b16 %v121
  %v609 = vunpack.c.h.b16 %v121
  %v610 = vunpack.c.l.b16 %v122
  %v611 = vunpack.c.h.b16 %v122
  %v612 = vunpack.c.l.b16 %v123
  %v613 = vunpack.c.h.b16 %v123
  %v614 = vunpack.c.l.b16 %v124
  %v615 = vunpack.c.h.b16 %v124
  %v616 = vunpack.c.l.b16 %v125
  %v617 = vunpack.c.h.b16 %v125
  %v618 = vunpack.c.l.b16 %v126
  %v619 = vunpack.c.h.b16 %v126
  %v620 = vunpack.c.l.b16 %v127
  %v621 = vunpack.c.h.b16 %v127
  %v622 = vunpack.c.l.b16 %v128
  %v623 = vunpack.c.h.b16 %v128
  %v624 = vunpack.c.l.b16 %v129
  %v625 = vunpack.c.h.b16 %v129
  %v626 = vunpack.c.l.b16 %v130
  %v627 = vunpack.c.h.b16 %v130
  %v628 = vunpack.c.l.b16 %v131
  %v629 = vunpack.c.h.b16 %v131
  %v630 = vunpack.c.l.b16 %v132
  %v631 = vunpack.c.h.b16 %v132
  %v632 = vunpack.c.l.b16 %v133
  %v633 = vunpack.c.h.b16 %v133
  %v634 = vunpack.c.l.b16 %v134
  %v635 = vunpack.c.h.b16 %v134
  %v636 = vunpack.c.l.b16 %v135
  %v637 = vunpack.c.h.b16 %v135
  %v638 = vunpack.c.l.b16 %v136
  %v639 = vunpack.c.h.b16 %v136
  %v640 = vunpack.c.l.b16 %v137
  %v641 = vunpack.c.h.b16 %v137
  %v642 = vunpack.c.l.b16 %v138
  %v643 = vunpack.c.h.b16 %v138
  %v644 = vunpack.c.l.b16 %v139
  %v645 = vunpack.c.h.b16 %v139
  %v646 = vunpack.c.l.b16 %v140
  %v647 = vunpack.c.h.b16 %v140
  %v648 = vunpack.c.l.b16 %v141
  %v649 = vunpack.c.h.b16 %v141
  %v650 = vunpack.c.l.b16 %v142
  %v651 = vunpack.c.h.b16 %v142
  %v652 = vunpack.c.l.b16 %v143
  %v653 = vunpack.c.h.b16 %v143
  %v654 = vunpack.c.l.b16 %v144
  %v655 = vunpack.c.h.b16 %v144
  %v656 = vunpack.c.l.b16 %v145
  %v657 = vunpack.c.h.b16 %v145
  %v658 = vunpack.c.l.b16 %v146
  %v659 = vunpack.c.h.b16 %v146
  %v660 = vunpack.c.l.b16 %v147
  %v661 = vunpack.c.h.b16 %v147
  %v662 = vunpack.c.l.b16 %v148
  %v663 = vunpack.c.h.b16 %v148
  %v664 = vunpack.c.l.b16 %v149
  %v665 = vunpack.c.h.b16 %v149
  %v666 = vunpack.c.l.b16 %v150
  %v667 = vunpack.c.h.b16 %v150
  %v668 = vunpack.c.l.b16 %v151
  %v669 = vunpack.c.h.b16 %v151
  %v670 = vunpack.c.l.b16 %v152
  %v671 = vunpack.c.h.b16 %v152
  %v672 = vunpack.c.l.b16 %v153
  %v673 = vunpack.c.h.b16 %v153
  %v674 = vunpack.c.l.b16 %v154
  %v675 = vunpack.c.h.b16 %v154
  %v676 = vunpack.c.l.b16 %v155
  %v677 = vunpack.c.h.b16 %v155
  %v678 = vunpack.c.l.b16 %v156
  %v679 = vunpack.c.h.b16 %v156
  %v680 = vunpack.c.l.b16 %v157
  %v681 = vunpack.c.h.b16 %v157
  %v682 = vunpack.c.l.b16 %v158
  %v683 = vunpack.c.h.b16 %v158
  %v684 = vunpack.c.l.b16 %v159
  %v685 = vunpack.c.h.b16 %v159
  %v686 = vunpack.c.l.b16 %v160
  %v687 = vunpack.c.h.b16 %v160
  %v688 = vunpack.c.l.b16 %v161
  %v689 = vunpack.c.h.b16 %v161
  %v690 = vunpack.c.l.b16 %v162
  %v691 = vunpack.c.h.b16 %v162
  %v692 = vunpack.c.l.b16 %v163
  %v693 = vunpack.c.h.b16 %v163
  %v694 = vunpack.c.l.b16 %v164
  %v695 = vunpack.c.h.b16 %v164
  %v696 = vunpack.c.l.b16 %v165
  %v697 = vunpack.c.h.b16 %v165
  %v698 = vunpack.c.l.b16 %v166
  %v699 = vunpack.c.h.b16 %v166
  %v700 = vunpack.c.l.b16 %v167
  %v701 = vunpack.c.h.b16 %v167
  %v702 = vunpack.c.l.b16 %v168
  %v703 = vunpack.c.h.b16 %v168
  %v704 = vunpack.c.l.b16 %v169
  %v705 = vunpack.c.h.b16 %v169
  %v706 = vunpack.c.l.b16 %v170
  %v707 = vunpack.c.h.b16 %v170
  %v708 = vunpack.c.l.b16 %v171
  %v709 = vunpack.c.h.b16 %v171
  %v710 = vunpack.c.l.b16 %v172
  %v711 = vunpack.c.h.b16 %v172
  %v712 = vunpack.c.l.b16 %v173
  %v713 = vunpack.c.h.b16 %v173
  %v714 = vunpack.c.l.b16 %v174
  %v715 = vunpack.c.h.b16 %v174
  %v716 = vunpack.c.l.b16 %v175
  %v717 = vunpack.c.h.b16 %v175
  %v718 = vunpack.c.l.b16 %v176
  %v719 = vunpack.c.h.b16 %v176
  %v720 = vunpack.c.l.b16 %v177
  %v721 = vunpack.c.h.b16 %v177
  %v722 = vunpack.c.l.b16 %v178
  %v723 = vunpack.c.h.b16 %v178
  %v724 = vunpack.c.l.b16 %v179
  %v725 = vunpack.c.h.b16 %v179
  %v726 = vunpack.c.l.b16 %v180
  %v727 = vunpack.c.h.b16 %v180
  %v728 = vunpack.c.l.b16 %v181
  %v729 = vunpack.c.h.b16 %v181
  %v730 = vunpack.c.l.b16 %v182
  %v731 = vunpack.c.h.b16 %v182
  %v732 = vunpack.c.l.b16 %v183
  %v733 = vunpack.c.h.b16 %v183
  %v734 = vunpack.c.l.b16 %v184
  %v735 = vunpack.c.h.b16 %v184
  %v736 = vunpack.c.l.b16 %v185
  %v737 = vunpack.c.h.b16 %v185
  %v738 = vunpack.c.l.b16 %v186
  %v739 = vunpack.c.h.b16 %v186
  %v740 = vunpack.c.l.b16 %v187
  %v741 = vunpack.c.h.b16 %v187
  %v742 = vunpack.c.l.b16 %v188
  %v743 = vunpack.c.h.b16 %v188
  %v744 = vunpack.c.l.b16 %v189
  %v745 = vunpack.c.h.b16 %v189
  %v746 = vunpack.c.l.b16 %v190
  %v747 = vunpack.c.h.b16 %v190
  %v748 = vunpack.c.l.b16 %v191
  %v749 = vunpack.c.h.b16 %v191
  %v750 = vunpack.c.l.b16 %v192
  %v751 = vunpack.c.h.b16 %v192
  %v752 = vunpack.c.l.b16 %v193
  %v753 = vunpack.c.h.b16 %v193
  %v754 = vunpack.c.l.b16 %v194
  %v755 = vunpack.c.h.b16 %v194
  %v756 = vunpack.c.l.b16 %v195
  %v757 = vunpack.c.h.b16 %v195
  %v758 = vunpack.c.l.b16 %v196
  %v759 = vunpack.c.h.b16 %v196
  %v760 = vunpack.c.l.b16 %v197
  %v761 = vunpack.c.h.b16 %v197
  %v762 = vunpack.c.l.b16 %v198
  %v763 = vunpack.c.h.b16 %v198
  %v764 = vunpack.c.l.b16 %v199
  %v765 = vunpack.c.h.b16 %v199
  %v766 = vunpack.c.l.b16 %v200
  %v767 = vunpack.c.h.b16 %v200
  %v768 = vunpack.c.l.b16 %v201
  %v769 = vunpack.c.h.b16 %v201
  %v770 = vunpack.c.l.b16 %v202
  %v771 = vunpack.c.h.b16 %v202
  %v772 = vunpack.c.l.b16 %v203
  %v773 = vunpack.c.h.b16 %v203
  %v774 = vunpack.c.l.b16 %v204
  %v775 = vunpack.c.h.b16 %v204
  %v776 = vunpack.c.l.b16 %v205
  %v777 = vunpack.c.h.b16 %v205
  %v778 = vunpack.c.l.b16 %v206
  %v779 = vunpack.c.h.b16 %v206
  %v780 = vunpack.c.l.b16 %v207
  %v781 = vunpack.c.h.b16 %v207
  %v782 = vunpack.c.l.b16 %v208
  %v783 = vunpack.c.h.b16 %v208
  %v784 = vunpack.c.l.b16 %v209
  %v785 = vunpack.c.h.b16 %v209
  %v786 = vunpack.c.l.b16 %v210
  %v787 = vunpack.c.h.b16 %v210
  %v788 = vunpack.c.l.b16 %v211
  %v789 = vunpack.c.h.b16 %v211
  %v790 = vunpack.c.l.b16 %v212
  %v791 = vunpack.c.h.b16 %v212
  %v792 = vunpack.c.l.b16 %v213
  %v793 = vunpack.c.h.b16 %v213
  %v794 = vunpack.c.l.b16 %v214
  %v795 = vunpack.c.h.b16 %v214
  %v796 = vunpack.c.l.b16 %v215
  %v797 = vunpack.c.h.b16 %v215
  %v798 = vunpack.c.l.b16 %v216
  %v799 = vunpack.c.h.b16 %v216
  %v800 = vunpack.c.l.b16 %v217
  %v801 = vunpack.c.h.b16 %v217
  %v802 = vunpack.c.l.b16 %v218
  %v803 = vunpack.c.h.b16 %v218
  %v804 = vunpack.c.l.b16 %v219
  %v805 = vunpack.c.h.b16 %v219
  %v806 = vunpack.c.l.b16 %v220
  %v807 = vunpack.c.h.b16 %v220
  %v808 = vunpack.c.l.b16 %v221
  %v809 = vunpack.c.h.b16 %v221
  %v810 = vunpack.c.l.b16 %v222
  %v811 = vunpack.c.h.b16 %v222
  %v812 = vunpack.c.l.b16 %v223
  %v813 = vunpack.c.h.b16 %v223
  %v814 = vunpack.c.l.b16 %v224
  %v815 = vunpack.c.h.b16 %v224
  %v816 = vunpack.c.l.b16 %v225
  %v817 = vunpack.c.h.b16 %v225
  %v818 = vunpack.c.l.b16 %v226
  %v819 = vunpack.c.h.b16 %v226
  %v820 = vunpack.c.l.b16 %v227
  %v821 = vunpack.c.h.b16 %v227
  %v822 = vunpack.c.l.b16 %v228
  %v823 = vunpack.c.h.b16 %v228
  %v824 = vunpack.c.l.b16 %v229
  %v825 = vunpack.c.h.b16 %v229
  %v826 = vunpack.c.l.b16 %v230
  %v827 = vunpack.c.h.b16 %v230
  %v828 = vunpack.c.l.b16 %v231
  %v829 = vunpack.c.h.b16 %v231
  %v830 = vunpack.c.l.b16 %v232
  %v831 = vunpack.c.h.b16 %v232
  %v832 = vunpack.c.l.b16 %v233
  %v833 = vunpack.c.h.b16 %v233
  %v834 = vunpack.c.l.b16 %v234
  %v835 = vunpack.c.h.b16 %v234
  %v836 = vunpack.c.l.b16 %v235
  %v837 = vunpack.c.h.b16 %v235
  %v838 = vunpack.c.l.b16 %v236
  %v839 = vunpack.c.h.b16 %v236
  %v840 = vunpack.c.l.b16 %v237
  %v841 = vunpack.c.h.b16 %v237
  %v842 = vunpack.c.l.b16 %v238
  %v843 = vunpack.c.h.b16 %v238
  %v844 = vunpack.c.l.b16 %v239
  %v845 = vunpack.c.h.b16 %v239
  %v846 = vunpack.c.l.b16 %v240
  %v847 = vunpack.c.h.b16 %v240
  %v848 = vunpack.c.l.b16 %v241
  %v849 = vunpack.c.h.b16 %v241
  %v850 = vunpack.c.l.b16 %v242
  %v851 = vunpack.c.h.b16 %v242
  %v852 = vunpack.c.l.b16 %v243
  %v853 = vunpack.c.h.b16 %v243
  %v854 = vpack.c.b16 %v466, %v462
  %v855 = vpack.c.b16 %v467, %v463
  %v856 = vpack.c.b16 %v468, %v464
  %v857 = vpack.c.b16 %v469, %v465
  %v858 = vpack.c.b16 %v474, %v470
  %v859 = vpack.c.b16 %v475, %v471
  %v860 = vpack.c.b16 %v476, %v472
  %v861 = vpack.c.b16 %v477, %v473
  %v862 = vpack.c.b16 %v482, %v478
  %v863 = vpack.c.b16 %v483, %v479
  %v864 = vpack.c.b16 %v484, %v480
  %v865 = vpack.c.b16 %v485, %v481
  %v866 = vpack.c.b16 %v490, %v486
  %v867 = vpack.c.b16 %v491, %v487
  %v868 = vpack.c.b16 %v492, %v488
  %v869 = vpack.c.b16 %v493, %v489
  %v870 = vpack.c.b16 %v498, %v494
  %v871 = vpack.c.b16 %v499, %v495
  %v872 = vpack.c.b16 %v500, %v496
  %v873 = vpack.c.b16 %v501, %v497
  %v874 = vpack.c.b16 %v506, %v502
  %v875 = vpack.c.b16 %v507, %v503
  %v876 = vpack.c.b16 %v508, %v504
  %v877 = vpack.c.b16 %v509, %v505
  %v878 = vpack.c.b16 %v514, %v510
  %v879 = vpack.c.b16 %v515, %v511
  %v880 = vpack.c.b16 %v516, %v512
  %v881 = vpack.c.b16 %v517, %v513
  %v882 = vpack.c.b16 %v522, %v518
  %v883 = vpack.c.b16 %v523, %v519
  %v884 = vpack.c.b16 %v524, %v520
  %v885 = vpack.c.b16 %v525, %v521
  %v886 = vpack.c.b16 %v530, %v526
  %v887 = vpack.c.b16 %v531, %v527
  %v888 = vpack.c.b16 %v532, %v528
  %v889 = vpack.c.b16 %v533, %v529
  %v890 = vpack.c.b16 %v538, %v534
  %v891 = vpack.c.b16 %v539, %v535
  %v892 = vpack.c.b16 %v540, %v536
  %v893 = vpack.c.b16 %v541, %v537
  %v894 = vpack.c.b16 %v546, %v542
  %v895 = vpack.c.b16 %v547, %v543
  %v896 = vpack.c.b16 %v548, %v544
  %v897 = vpack.c.b16 %v549, %v545
  %v898 = vpack.c.b16 %v554, %v550
  %v899 = vpack.c.b16 %v555, %v551
  %v900 = vpack.c.b16 %v556, %v552
  %v901 = vpack.c.b16 %v557, %v553
  %v902 = vpack.c.b16 %v562, %v558
  %v903 = vpack.c.b16 %v563, %v559
  %v904 = vpack.c.b16 %v564, %v560
  %v905 = vpack.c.b16 %v565, %v561
  %v906 = vpack.c.b16 %v570, %v566
  %v907 = vpack.c.b16 %v571, %v567
  %v908 = vpack.c.b16 %v572, %v568
  %v909 = vpack.c.b16 %v573, %v569
  %v910 = vpack.c.b16 %v578, %v574
  %v911 = vpack.c.b16 %v579, %v575
  %v912 = vpack.c.b16 %v580, %v576
  %v913 = vpack.c.b16 %v581, %v577
  %v914 = vpack.c.b16 %v586, %v582
  %v915 = vpack.c.b16 %v587, %v583
  %v916 = vpack.c.b16 %v588, %v584
  %v917 = vpack.c.b16 %v589, %v585
  %v918 = vpack.c.b16 %v594, %v590
  %v919 = vpack.c.b16 %v595, %v591
  %v920 = vpack.c.b16 %v596, %v592
  %v921 = vpack.c.b16 %v597, %v593
  %v922 = vpack.c.b16 %v602, %v598
  %v923 = vpack.c.b16 %v603, %v599
  %v924 = vpack.c.b16 %v604, %v600
  %v925 = vpack.c.b16 %v605, %v601
  %v926 = vpack.c.b16 %v610, %v606
  %v927 = vpack.c.b16 %v611, %v607
  %v928 = vpack.c.b16 %v612, %v608
  %v929 = vpack.c.b16 %v613, %v609
  %v930 = vpack.c.b16 %v618, %v614
  %v931 = vpack.c.b16 %v619, %v615
  %v932 = vpack.c.b16 %v620, %v616
  %v933 = vpack.c.b16 %v621, %v617
  %v934 = vpack.c.b16 %v626, %v622
  %v935 = vpack.c.b16 %v627, %v623
  %v936 = vpack.c.b16 %v628, %v624
  %v937 = vpack.c.b16 %v629, %v625
  %v938 = vpack.c.b16 %v634, %v630
  %v939 = vpack.c.b16 %v635, %v631
  %v940 = vpack.c.b16 %v636, %v632
  %v941 = vpack.c.b16 %v637, %v633
  %v942 = vpack.c.b16 %v642, %v638
  %v943 = vpack.c.b16 %v643, %v639
  %v944 = vpack.c.b16 %v644, %v640
  %v945 = vpack.c.b16 %v645, %v641
  %v946 = vpack.c.b16 %v650, %v646
  %v947 = vpack.c.b16 %v651, %v647
  %v948 = vpack.c.b16 %v652, %v648
  %v949 = vpack.c.b16 %v653, %v649
  %v950 = vpack.c.b16 %v658, %v654
  %v951 = vpack.c.b16 %v659, %v655
  %v952 = vpack.c.b16 %v660, %v656
  %v953 = vpack.c.b16 %v661, %v657
  %v954 = vpack.c.b16 %v666, %v662
  %v955 = vpack.c.b16 %v667, %v663
  %v956 = vpack.c.b16 %v668, %v664
  %v957 = vpack.c.b16 %v669, %v665
  %v958 = vpack.c.b16 %v674, %v670
  %v959 = vpack.c.b16 %v675, %v671
  %v960 = vpack.c.b16 %v676, %v672
  %v961 = vpack.c.b16 %v677, %v673
  %v962 = vpack.c.b16 %v682, %v678
  %v963 = vpack.c.b16 %v683, %v679
  %v964 = vpack.c.b16 %v684, %v680
  %v965 = vpack.c.b16 %v685, %v681
  %v966 = vpack.c.b16 %v690, %v686
  %v967 = vpack.c.b16 %v691, %v687
  %v968 = vpack.c.b16 %v692, %v688
  %v969 = vpack.c.b16 %v693, %v689
  %v970 = vpack.c.b16 %v698, %v694
  %v971 = vpack.c.b16 %v699, %v695
  %v972 = vpack.c.b16 %v700, %v696
  %v973 = vpack.c.b16 %v701, %v697
  %v974 = vpack.c.b16 %v706, %v702
  %v975 = vpack.c.b16 %v707, %v703
  %v976 = vpack.c.b16 %v708, %v704
  %v977 = vpack.c.b16 %v709, %v705
  %v978 = vpack.c.b16 %v714, %v710
  %v979 = vpack.c.b16 %v715, %v711
  %v980 = vpack.c.b16 %v716, %v712
  %v981 = vpack.c.b16 %v717, %v713
  %v982 = vpack.c.b16 %v722, %v718
  %v983 = vpack.c.b16 %v723, %v719
  %v984 = vpack.c.b16 %v724, %v720
  %v985 = vpack.c.b16 %v725, %v721
  %v986 = vpack.c.b16 %v730, %v726
  %v987 = vpack.c.b16 %v731, %v727
  %v988 = vpack.c.b16 %v732, %v728
  %v989 = vpack.c.b16 %v733, %v729
  %v990 = vpack.c.b16 %v738, %v734
  %v991 = vpack.c.b16 %v739, %v735
  %v992 = vpack.c.b16 %v740, %v736
  %v993 = vpack.c.b16 %v741, %v737
  %v994 = vpack.c.b16 %v746, %v742
  %v995 = vpack.c.b16 %v747, %v743
  %v996 = vpack.c.b16 %v748, %v744
  %v997 = vpack.c.b16 %v749, %v745
  %v998 = vpack.c.b16 %v754, %v750
  %v999 = vpack.c.b16 %v755, %v751
  %v1000 = vpack.c.b16 %v756, %v752
  %v1001 = vpack.c.b16 %v757, %v753
  %v1002 = vpack.c.b16 %v762, %v758
  %v1003 = vpack.c.b16 %v763, %v759
  %v1004 = vpack.c.b16 %v764, %v760
  %v1005 = vpack.c.b16 %v765, %v761
  %v1006 = vpack.c.b16 %v770, %v766
  %v1007 = vpack.c.b16 %v771, %v767
  %v1008 = vpack.c.b16 %v772, %v768
  %v1009 = vpack.c.b16 %v773, %v769
  %v1010 = vpack.c.b16 %v778, %v774
  %v1011 = vpack.c.b16 %v779, %v775
  %v1012 = vpack.c.b16 %v780, %v776
  %v1013 = vpack.c.b16 %v781, %v777
  %v1014 = vpack.c.b16 %v786, %v782
  %v1015 = vpack.c.b16 %v787, %v783
  %v1016 = vpack.c.b16 %v788, %v784
  %v1017 = vpack.c.b16 %v789, %v785
  %v1018 = vpack.c.b16 %v794, %v790
  %v1019 = vpack.c.b16 %v795, %v791
  %v1020 = vpack.c.b16 %v796, %v792
  %v1021 = vpack.c.b16 %v797, %v793
  %v1022 = vpack.c.b16 %v802, %v798
  %v1023 = vpack.c.b16 %v803, %v799
  %v1024 = vpack.c.b16 %v804, %v800
  %v1025 = vpack.c.b16 %v805, %v801
  %v1026 = vpack.c.b16 %v810, %v806
  %v1027 = vpack.c.b16 %v811, %v807
  %v1028 = vpack.c.b16 %v812, %v808
  %v1029 = vpack.c.b16 %v813, %v809
  %v1030 = vpack.c.b16 %v818, %v814
  %v1031 = vpack.c.b16 %v819, %v815
  %v1032 = vpack.c.b16 %v820, %v816
  %v1033 = vpack.c.b16 %v821, %v817
  %v1034 = vpack.c.b16 %v826, %v822
  %v1035 = vpack.c.b16 %v827, %v823
  %v1036 = vpack.c.b16 %v828, %v824
  %v1037 = vpack.c.b16 %v829, %v825
  %v1038 = vpack.c.b16 %v834, %v830
  %v1039 = vpack.c.b16 %v835, %v831
  %v1040 = vpack.c.b16 %v836, %v832
  %v1041 = vpack.c.b16 %v837, %v833
  %v1042 = vpack.c.b16 %v842, %v838
  %v1043 = vpack.c.b16 %v843, %v839
  %v1044 = vpack.c.b16 %v844, %v840
  %v1045 = vpack.c.b16 %v845, %v841
  %v1046 = vpack.c.b16 %v850, %v846
  %v1047 = vpack.c.b16 %v851, %v847
  %v1048 = vpack.c.b16 %v852, %v848
  %v1049 = vpack.c.b16 %v853, %v849
  %vm1246 = vcmask 130048
  %v1248 = vsel %vm1246, %v47, 0
  %1250 = vmatprep.subr.bf16.mxu0 %v855
  %1251 = vmatpush1.bf16.msra.mxu0 %v854
  %1252 = vmatprep.subr.bf16.mxu0 %v859
  %1253 = vmatpush1.bf16.msra.mxu0 %v858
  %1254 = vmatprep.subr.bf16.mxu0 %v863
  %1255 = vmatpush1.bf16.msra.mxu0 %v862
  %1256 = vmatprep.subr.bf16.mxu0 %v867
  %1257 = vmatpush1.bf16.msra.mxu0 %v866
  %1258 = vmatprep.subr.bf16.mxu0 %v871
  %1259 = vmatpush1.bf16.msra.mxu0 %v870
  %1260 = vmatprep.subr.bf16.mxu0 %v875
  %1261 = vmatpush1.bf16.msra.mxu0 %v874
  %1262 = vmatprep.subr.bf16.mxu0 %v879
  %1263 = vmatpush1.bf16.msra.mxu0 %v878
  %1264 = vmatprep.subr.bf16.mxu0 %v883
  %1265 = vmatpush1.bf16.msra.mxu0 %v882
  %1266 = vmatprep.subr.bf16.mxu0 %v887
  %1267 = vmatpush1.bf16.msra.mxu0 %v886
  %1268 = vmatprep.subr.bf16.mxu0 %v891
  %1269 = vmatpush1.bf16.msra.mxu0 %v890
  %1270 = vmatprep.subr.bf16.mxu0 %v895
  %1271 = vmatpush1.bf16.msra.mxu0 %v894
  %1272 = vmatprep.subr.bf16.mxu0 %v899
  %1273 = vmatpush1.bf16.msra.mxu0 %v898
  %1274 = vmatprep.subr.bf16.mxu0 %v903
  %1275 = vmatpush1.bf16.msra.mxu0 %v902
  %1276 = vmatprep.subr.bf16.mxu0 %v907
  %1277 = vmatpush1.bf16.msra.mxu0 %v906
  %1278 = vmatprep.subr.bf16.mxu0 %v911
  %1279 = vmatpush1.bf16.msra.mxu0 %v910
  %1280 = vmatprep.subr.bf16.mxu0 %v915
  %1281 = vmatpush1.bf16.msra.mxu0 %v914
  %1282 = vmatprep.mubr.bf16.mxu0 %v42
  %1283 = vmatmul.mubr.bf16.gmra.mrb[0].mxu0 %v41
  %v1284 = vpop.f32.mrb[0].mxu0
  %v1285 = vadd.f32 %v249, %v1284
  %v1286 = vpop.f32.mrb[0].mxu0
  %v1287 = vadd.f32 %v253, %v1286
  %v1288 = vpop.f32.mrb[0].mxu0
  %v1289 = vadd.f32 %v249, %v1288
  %v1290 = vpop.f32.mrb[0].mxu0
  %v1291 = vadd.f32 %v253, %v1290
  %1292 = vdwg.mxu0
  %1293 = vmatprep.subr.bf16.mxu0 %v919
  %1294 = vmatpush1.bf16.msra.mxu0 %v918
  %1295 = vmatprep.subr.bf16.mxu0 %v923
  %1296 = vmatpush1.bf16.msra.mxu0 %v922
  %1297 = vmatprep.subr.bf16.mxu0 %v927
  %1298 = vmatpush1.bf16.msra.mxu0 %v926
  %1299 = vmatprep.subr.bf16.mxu0 %v931
  %1300 = vmatpush1.bf16.msra.mxu0 %v930
  %1301 = vmatprep.subr.bf16.mxu0 %v935
  %1302 = vmatpush1.bf16.msra.mxu0 %v934
  %1303 = vmatprep.subr.bf16.mxu0 %v939
  %1304 = vmatpush1.bf16.msra.mxu0 %v938
  %1305 = vmatprep.subr.bf16.mxu0 %v943
  %1306 = vmatpush1.bf16.msra.mxu0 %v942
  %1307 = vmatprep.subr.bf16.mxu0 %v947
  %1308 = vmatpush1.bf16.msra.mxu0 %v946
  %1309 = vmatprep.subr.bf16.mxu0 %v951
  %1310 = vmatpush1.bf16.msra.mxu0 %v950
  %1311 = vmatprep.subr.bf16.mxu0 %v955
  %1312 = vmatpush1.bf16.msra.mxu0 %v954
  %1313 = vmatprep.subr.bf16.mxu0 %v959
  %1314 = vmatpush1.bf16.msra.mxu0 %v958
  %1315 = vmatprep.subr.bf16.mxu0 %v963
  %1316 = vmatpush1.bf16.msra.mxu0 %v962
  %1317 = vmatprep.subr.bf16.mxu0 %v967
  %1318 = vmatpush1.bf16.msra.mxu0 %v966
  %1319 = vmatprep.subr.bf16.mxu0 %v971
  %1320 = vmatpush1.bf16.msra.mxu0 %v970
  %1321 = vmatprep.subr.bf16.mxu0 %v975
  %1322 = vmatpush1.bf16.msra.mxu0 %v974
  %1323 = vmatprep.subr.bf16.mxu0 %v979
  %1324 = vmatpush1.bf16.msra.mxu0 %v978
  %1325 = vmatprep.mubr.bf16.mxu0 %v44
  %1326 = vmatmul.mubr.bf16.gmra.mrb[0].mxu0 %v43
  %v1327 = vpop.f32.mrb[0].mxu0
  %v1328 = vadd.f32 %v1285, %v1327
  %v1329 = vpop.f32.mrb[0].mxu0
  %v1330 = vadd.f32 %v1287, %v1329
  %v1331 = vpop.f32.mrb[0].mxu0
  %v1332 = vadd.f32 %v1289, %v1331
  %v1333 = vpop.f32.mrb[0].mxu0
  %v1334 = vadd.f32 %v1291, %v1333
  %1335 = vdwg.mxu0
  %1336 = vmatprep.subr.bf16.mxu0 %v983
  %1337 = vmatpush1.bf16.msra.mxu0 %v982
  %1338 = vmatprep.subr.bf16.mxu0 %v987
  %1339 = vmatpush1.bf16.msra.mxu0 %v986
  %1340 = vmatprep.subr.bf16.mxu0 %v991
  %1341 = vmatpush1.bf16.msra.mxu0 %v990
  %1342 = vmatprep.subr.bf16.mxu0 %v995
  %1343 = vmatpush1.bf16.msra.mxu0 %v994
  %1344 = vmatprep.subr.bf16.mxu0 %v999
  %1345 = vmatpush1.bf16.msra.mxu0 %v998
  %1346 = vmatprep.subr.bf16.mxu0 %v1003
  %1347 = vmatpush1.bf16.msra.mxu0 %v1002
  %1348 = vmatprep.subr.bf16.mxu0 %v1007
  %1349 = vmatpush1.bf16.msra.mxu0 %v1006
  %1350 = vmatprep.subr.bf16.mxu0 %v1011
  %1351 = vmatpush1.bf16.msra.mxu0 %v1010
  %1352 = vmatprep.subr.bf16.mxu0 %v1015
  %1353 = vmatpush1.bf16.msra.mxu0 %v1014
  %1354 = vmatprep.subr.bf16.mxu0 %v1019
  %1355 = vmatpush1.bf16.msra.mxu0 %v1018
  %1356 = vmatprep.subr.bf16.mxu0 %v1023
  %1357 = vmatpush1.bf16.msra.mxu0 %v1022
  %1358 = vmatprep.subr.bf16.mxu0 %v1027
  %1359 = vmatpush1.bf16.msra.mxu0 %v1026
  %1360 = vmatprep.subr.bf16.mxu0 %v1031
  %1361 = vmatpush1.bf16.msra.mxu0 %v1030
  %1362 = vmatprep.subr.bf16.mxu0 %v1035
  %1363 = vmatpush1.bf16.msra.mxu0 %v1034
  %1364 = vmatprep.subr.bf16.mxu0 %v1039
  %1365 = vmatpush1.bf16.msra.mxu0 %v1038
  %1366 = vmatprep.subr.bf16.mxu0 %v1043
  %1367 = vmatpush1.bf16.msra.mxu0 %v1042
  %1368 = vmatprep.mubr.bf16.mxu0 %v46
  %1369 = vmatmul.mubr.bf16.gmra.mrb[0].mxu0 %v45
  %v1370 = vpop.f32.mrb[0].mxu0
  %v1371 = vadd.f32 %v1328, %v1370
  %v1372 = vpop.f32.mrb[0].mxu0
  %v1373 = vadd.f32 %v1330, %v1372
  %v1374 = vpop.f32.mrb[0].mxu0
  %v1375 = vadd.f32 %v1332, %v1374
  %v1376 = vpop.f32.mrb[0].mxu0
  %v1377 = vadd.f32 %v1334, %v1376
  %1378 = vdwg.mxu0
  %1379 = vmatprep.subr.bf16.mxu0 %v1047
  %1380 = vmatpush1.bf16.msra.mxu0 %v1046
  %1381 = vmatprep.subr.bf16.mxu0 0
  %1382 = vmatpush1.bf16.msra.mxu0 0
  %1383 = vmatprep.subr.bf16.mxu0 0
  %1384 = vmatpush1.bf16.msra.mxu0 0
  %1385 = vmatprep.subr.bf16.mxu0 0
  %1386 = vmatpush1.bf16.msra.mxu0 0
  %1387 = vmatprep.subr.bf16.mxu0 0
  %1388 = vmatpush1.bf16.msra.mxu0 0
  %1389 = vmatprep.subr.bf16.mxu0 0
  %1390 = vmatpush1.bf16.msra.mxu0 0
  %1391 = vmatprep.subr.bf16.mxu0 0
  %1392 = vmatpush1.bf16.msra.mxu0 0
  %1393 = vmatprep.subr.bf16.mxu0 0
  %1394 = vmatpush1.bf16.msra.mxu0 0
  %1395 = vmatprep.subr.bf16.mxu0 0
  %1396 = vmatpush1.bf16.msra.mxu0 0
  %1397 = vmatprep.subr.bf16.mxu0 0
  %1398 = vmatpush1.bf16.msra.mxu0 0
  %1399 = vmatprep.subr.bf16.mxu0 0
  %1400 = vmatpush1.bf16.msra.mxu0 0
  %1401 = vmatprep.subr.bf16.mxu0 0
  %1402 = vmatpush1.bf16.msra.mxu0 0
  %1403 = vmatprep.subr.bf16.mxu0 0
  %1404 = vmatpush1.bf16.msra.mxu0 0
  %1405 = vmatprep.subr.bf16.mxu0 0
  %1406 = vmatpush1.bf16.msra.mxu0 0
  %1407 = vmatprep.subr.bf16.mxu0 0
  %1408 = vmatpush1.bf16.msra.mxu0 0
  %1409 = vmatprep.subr.bf16.mxu0 0
  %1410 = vmatpush1.bf16.msra.mxu0 0
  %1411 = vmatprep.mubr.bf16.mxu0 0
  %1412 = vmatmul.mubr.bf16.gmra.mrb[0].mxu0 %v1248
  %v1413 = vpop.f32.mrb[0].mxu0
  %v1414 = vadd.f32 %v1371, %v1413
  %v1415 = vpop.f32.mrb[0].mxu0
  %v1416 = vadd.f32 %v1373, %v1415
  %v1417 = vpop.f32.mrb[0].mxu0
  %v1418 = vadd.f32 %v1375, %v1417
  %v1419 = vpop.f32.mrb[0].mxu0
  %v1420 = vadd.f32 %v1377, %v1419
  %1421 = vdwg.mxu0
  %1422 = vmatprep.subr.bf16.mxu0 %v857
  %1423 = vmatpush1.bf16.msra.mxu0 %v856
  %1424 = vmatprep.subr.bf16.mxu0 %v861
  %1425 = vmatpush1.bf16.msra.mxu0 %v860
  %1426 = vmatprep.subr.bf16.mxu0 %v865
  %1427 = vmatpush1.bf16.msra.mxu0 %v864
  %1428 = vmatprep.subr.bf16.mxu0 %v869
  %1429 = vmatpush1.bf16.msra.mxu0 %v868
  %1430 = vmatprep.subr.bf16.mxu0 %v873
  %1431 = vmatpush1.bf16.msra.mxu0 %v872
  %1432 = vmatprep.subr.bf16.mxu0 %v877
  %1433 = vmatpush1.bf16.msra.mxu0 %v876
  %1434 = vmatprep.subr.bf16.mxu0 %v881
  %1435 = vmatpush1.bf16.msra.mxu0 %v880
  %1436 = vmatprep.subr.bf16.mxu0 %v885
  %1437 = vmatpush1.bf16.msra.mxu0 %v884
  %1438 = vmatprep.subr.bf16.mxu0 %v889
  %1439 = vmatpush1.bf16.msra.mxu0 %v888
  %1440 = vmatprep.subr.bf16.mxu0 %v893
  %1441 = vmatpush1.bf16.msra.mxu0 %v892
  %1442 = vmatprep.subr.bf16.mxu0 %v897
  %1443 = vmatpush1.bf16.msra.mxu0 %v896
  %1444 = vmatprep.subr.bf16.mxu0 %v901
  %1445 = vmatpush1.bf16.msra.mxu0 %v900
  %1446 = vmatprep.subr.bf16.mxu0 %v905
  %1447 = vmatpush1.bf16.msra.mxu0 %v904
  %1448 = vmatprep.subr.bf16.mxu0 %v909
  %1449 = vmatpush1.bf16.msra.mxu0 %v908
  %1450 = vmatprep.subr.bf16.mxu0 %v913
  %1451 = vmatpush1.bf16.msra.mxu0 %v912
  %1452 = vmatprep.subr.bf16.mxu0 %v917
  %1453 = vmatpush1.bf16.msra.mxu0 %v916
  %1454 = vmatprep.mubr.bf16.mxu0 %v42
  %1455 = vmatmul.mubr.bf16.gmra.mrb[0].mxu0 %v41
  %v1456 = vpop.f32.mrb[0].mxu0
  %v1457 = vadd.f32 %v257, %v1456
  %v1458 = vpop.f32.mrb[0].mxu0
  %v1459 = vadd.f32 %v261, %v1458
  %v1460 = vpop.f32.mrb[0].mxu0
  %v1461 = vadd.f32 %v257, %v1460
  %v1462 = vpop.f32.mrb[0].mxu0
  %v1463 = vadd.f32 %v261, %v1462
  %1464 = vdwg.mxu0
  %1465 = vmatprep.subr.bf16.mxu0 %v921
  %1466 = vmatpush1.bf16.msra.mxu0 %v920
  %1467 = vmatprep.subr.bf16.mxu0 %v925
  %1468 = vmatpush1.bf16.msra.mxu0 %v924
  %1469 = vmatprep.subr.bf16.mxu0 %v929
  %1470 = vmatpush1.bf16.msra.mxu0 %v928
  %1471 = vmatprep.subr.bf16.mxu0 %v933
  %1472 = vmatpush1.bf16.msra.mxu0 %v932
  %1473 = vmatprep.subr.bf16.mxu0 %v937
  %1474 = vmatpush1.bf16.msra.mxu0 %v936
  %1475 = vmatprep.subr.bf16.mxu0 %v941
  %1476 = vmatpush1.bf16.msra.mxu0 %v940
  %1477 = vmatprep.subr.bf16.mxu0 %v945
  %1478 = vmatpush1.bf16.msra.mxu0 %v944
  %1479 = vmatprep.subr.bf16.mxu0 %v949
  %1480 = vmatpush1.bf16.msra.mxu0 %v948
  %1481 = vmatprep.subr.bf16.mxu0 %v953
  %1482 = vmatpush1.bf16.msra.mxu0 %v952
  %1483 = vmatprep.subr.bf16.mxu0 %v957
  %1484 = vmatpush1.bf16.msra.mxu0 %v956
  %1485 = vmatprep.subr.bf16.mxu0 %v961
  %1486 = vmatpush1.bf16.msra.mxu0 %v960
  %1487 = vmatprep.subr.bf16.mxu0 %v965
  %1488 = vmatpush1.bf16.msra.mxu0 %v964
  %1489 = vmatprep.subr.bf16.mxu0 %v969
  %1490 = vmatpush1.bf16.msra.mxu0 %v968
  %1491 = vmatprep.subr.bf16.mxu0 %v973
  %1492 = vmatpush1.bf16.msra.mxu0 %v972
  %1493 = vmatprep.subr.bf16.mxu0 %v977
  %1494 = vmatpush1.bf16.msra.mxu0 %v976
  %1495 = vmatprep.subr.bf16.mxu0 %v981
  %1496 = vmatpush1.bf16.msra.mxu0 %v980
  %1497 = vmatprep.mubr.bf16.mxu0 %v44
  %1498 = vmatmul.mubr.bf16.gmra.mrb[0].mxu0 %v43
  %v1499 = vpop.f32.mrb[0].mxu0
  %v1500 = vadd.f32 %v1457, %v1499
  %v1501 = vpop.f32.mrb[0].mxu0
  %v1502 = vadd.f32 %v1459, %v1501
  %v1503 = vpop.f32.mrb[0].mxu0
  %v1504 = vadd.f32 %v1461, %v1503
  %v1505 = vpop.f32.mrb[0].mxu0
  %v1506 = vadd.f32 %v1463, %v1505
  %1507 = vdwg.mxu0
  %1508 = vmatprep.subr.bf16.mxu0 %v985
  %1509 = vmatpush1.bf16.msra.mxu0 %v984
  %1510 = vmatprep.subr.bf16.mxu0 %v989
  %1511 = vmatpush1.bf16.msra.mxu0 %v988
  %1512 = vmatprep.subr.bf16.mxu0 %v993
  %1513 = vmatpush1.bf16.msra.mxu0 %v992
  %1514 = vmatprep.subr.bf16.mxu0 %v997
  %1515 = vmatpush1.bf16.msra.mxu0 %v996
  %1516 = vmatprep.subr.bf16.mxu0 %v1001
  %1517 = vmatpush1.bf16.msra.mxu0 %v1000
  %1518 = vmatprep.subr.bf16.mxu0 %v1005
  %1519 = vmatpush1.bf16.msra.mxu0 %v1004
  %1520 = vmatprep.subr.bf16.mxu0 %v1009
  %1521 = vmatpush1.bf16.msra.mxu0 %v1008
  %1522 = vmatprep.subr.bf16.mxu0 %v1013
  %1523 = vmatpush1.bf16.msra.mxu0 %v1012
  %1524 = vmatprep.subr.bf16.mxu0 %v1017
  %1525 = vmatpush1.bf16.msra.mxu0 %v1016
  %1526 = vmatprep.subr.bf16.mxu0 %v1021
  %1527 = vmatpush1.bf16.msra.mxu0 %v1020
  %1528 = vmatprep.subr.bf16.mxu0 %v1025
  %1529 = vmatpush1.bf16.msra.mxu0 %v1024
  %1530 = vmatprep.subr.bf16.mxu0 %v1029
  %1531 = vmatpush1.bf16.msra.mxu0 %v1028
  %1532 = vmatprep.subr.bf16.mxu0 %v1033
  %1533 = vmatpush1.bf16.msra.mxu0 %v1032
  %1534 = vmatprep.subr.bf16.mxu0 %v1037
  %1535 = vmatpush1.bf16.msra.mxu0 %v1036
  %1536 = vmatprep.subr.bf16.mxu0 %v1041
  %1537 = vmatpush1.bf16.msra.mxu0 %v1040
  %1538 = vmatprep.subr.bf16.mxu0 %v1045
  %1539 = vmatpush1.bf16.msra.mxu0 %v1044
  %1540 = vmatprep.mubr.bf16.mxu0 %v46
  %1541 = vmatmul.mubr.bf16.gmra.mrb[0].mxu0 %v45
  %v1542 = vpop.f32.mrb[0].mxu0
  %v1543 = vadd.f32 %v1500, %v1542
  %v1544 = vpop.f32.mrb[0].mxu0
  %v1545 = vadd.f32 %v1502, %v1544
  %v1546 = vpop.f32.mrb[0].mxu0
  %v1547 = vadd.f32 %v1504, %v1546
  %v1548 = vpop.f32.mrb[0].mxu0
  %v1549 = vadd.f32 %v1506, %v1548
  %1550 = vdwg.mxu0
  %1551 = vmatprep.subr.bf16.mxu0 %v1049
  %1552 = vmatpush1.bf16.msra.mxu0 %v1048
  %1553 = vmatprep.subr.bf16.mxu0 0
  %1554 = vmatpush1.bf16.msra.mxu0 0
  %1555 = vmatprep.subr.bf16.mxu0 0
  %1556 = vmatpush1.bf16.msra.mxu0 0
  %1557 = vmatprep.subr.bf16.mxu0 0
  %1558 = vmatpush1.bf16.msra.mxu0 0
  %1559 = vmatprep.subr.bf16.mxu0 0
  %1560 = vmatpush1.bf16.msra.mxu0 0
  %1561 = vmatprep.subr.bf16.mxu0 0
  %1562 = vmatpush1.bf16.msra.mxu0 0
  %1563 = vmatprep.subr.bf16.mxu0 0
  %1564 = vmatpush1.bf16.msra.mxu0 0
  %1565 = vmatprep.subr.bf16.mxu0 0
  %1566 = vmatpush1.bf16.msra.mxu0 0
  %1567 = vmatprep.subr.bf16.mxu0 0
  %1568 = vmatpush1.bf16.msra.mxu0 0
  %1569 = vmatprep.subr.bf16.mxu0 0
  %1570 = vmatpush1.bf16.msra.mxu0 0
  %1571 = vmatprep.subr.bf16.mxu0 0
  %1572 = vmatpush1.bf16.msra.mxu0 0
  %1573 = vmatprep.subr.bf16.mxu0 0
  %1574 = vmatpush1.bf16.msra.mxu0 0
  %1575 = vmatprep.subr.bf16.mxu0 0
  %1576 = vmatpush1.bf16.msra.mxu0 0
  %1577 = vmatprep.subr.bf16.mxu0 0
  %1578 = vmatpush1.bf16.msra.mxu0 0
  %1579 = vmatprep.subr.bf16.mxu0 0
  %1580 = vmatpush1.bf16.msra.mxu0 0
  %1581 = vmatprep.subr.bf16.mxu0 0
  %1582 = vmatpush1.bf16.msra.mxu0 0
  %1583 = vmatprep.mubr.bf16.mxu0 0
  %1584 = vmatmul.mubr.bf16.gmra.mrb[0].mxu0 %v1248
  %v1585 = vpop.f32.mrb[0].mxu0
  %v1586 = vadd.f32 %v1543, %v1585
  %v1587 = vpop.f32.mrb[0].mxu0
  %v1588 = vadd.f32 %v1545, %v1587
  %v1589 = vpop.f32.mrb[0].mxu0
  %v1590 = vadd.f32 %v1547, %v1589
  %v1591 = vpop.f32.mrb[0].mxu0
  %v1592 = vadd.f32 %v1549, %v1591
  %1593 = vdwg.mxu0
  %v1594 = vmax.f32 %v1414, 0.0
  %v1595 = vmax.f32 %v1416, 0.0
  %v1596 = vmax.f32 %v1586, 0.0
  %v1597 = vmax.f32 %v1588, 0.0
  %v1598 = vmax.f32 %v1418, 0.0
  %v1599 = vmax.f32 %v1420, 0.0
  %v1600 = vmax.f32 %v1590, 0.0
  %v1601 = vmax.f32 %v1592, 0.0
  %v1602 = vpack.c.bf16 %v1598, %v1594
  %v1603 = vpack.c.bf16 %v1599, %v1595
  %v1604 = vpack.c.bf16 %v1600, %v1596
  %v1605 = vpack.c.bf16 %v1601, %v1597
  %v1606 = vld [vmem:[%s3] sm:$0xff]
  %v1607 = vld [vmem:[%s3 + $0x8] sm:$0xff]
  %v1608 = vld [vmem:[%s3 + $0x10] sm:$0xff]
  %v1609 = vld [vmem:[%s3 + $0x18] sm:$0xff]
  %v1610 = vld [vmem:[%s3 + $0x20] sm:$0xff]
  %v1611 = vld [vmem:[%s3 + $0x28] sm:$0xff]
  %v1612 = vld [vmem:[%s3 + $0x30] sm:$0xff]
  %v1613 = vld [vmem:[%s3 + $0x38] sm:$0xff]
  %v1614 = vld [vmem:[%s3 + $0x40] sm:$0xff]
  %v1615 = vld [vmem:[%s3 + $0x48] sm:$0xff]
  %v1616 = vld [vmem:[%s3 + $0x50] sm:$0xff]
  %v1617 = vld [vmem:[%s3 + $0x58] sm:$0xff]
  %v1618 = vld [vmem:[%s3 + $0x60] sm:$0xff]
  %v1619 = vld [vmem:[%s3 + $0x68] sm:$0xff]
  %v1620 = vld [vmem:[%s3 + $0x70] sm:$0xff]
  %v1621 = vld [vmem:[%s3 + $0x78] sm:$0xff]
  %v1622 = vld [vmem:[%s3 + $0x80] sm:$0xff]
  %v1623 = vld [vmem:[%s3 + $0x88] sm:$0xff]
  %v1624 = vld [vmem:[%s3 + $0x90] sm:$0xff]
  %v1625 = vld [vmem:[%s3 + $0x98] sm:$0xff]
  %v1626 = vld [vmem:[%s3 + $0xa0] sm:$0xff]
  %v1627 = vld [vmem:[%s3 + $0xa8] sm:$0xff]
  %v1628 = vld [vmem:[%s3 + $0xb0] sm:$0xff]
  %v1629 = vld [vmem:[%s3 + $0xb8] sm:$0xff]
  %v1630 = vld [vmem:[%s3 + $0xc0] sm:$0xff]
  %v1631 = vld [vmem:[%s3 + $0xc8] sm:$0xff]
  %v1632 = vld [vmem:[%s3 + $0xd0] sm:$0xff]
  %v1633 = vld [vmem:[%s3 + $0xd8] sm:$0xff]
  %v1634 = vld [vmem:[%s3 + $0xe0] sm:$0xff]
  %v1635 = vld [vmem:[%s3 + $0xe8] sm:$0xff]
  %v1636 = vld [vmem:[%s3 + $0xf0] sm:$0xff]
  %v1637 = vld [vmem:[%s3 + $0xf8] sm:$0xff]
  %v1638 = vld [vmem:[%s3 + $0x100] sm:$0xff]
  %v1639 = vld [vmem:[%s3 + $0x108] sm:$0xff]
  %v1640 = vld [vmem:[%s3 + $0x110] sm:$0xff]
  %v1641 = vld [vmem:[%s3 + $0x118] sm:$0xff]
  %v1642 = vld [vmem:[%s3 + $0x120] sm:$0xff]
  %v1643 = vld [vmem:[%s3 + $0x128] sm:$0xff]
  %v1644 = vld [vmem:[%s3 + $0x130] sm:$0xff]
  %v1645 = vld [vmem:[%s3 + $0x138] sm:$0xff]
  %v1646 = vld [vmem:[%s3 + $0x140] sm:$0xff]
  %v1647 = vld [vmem:[%s3 + $0x148] sm:$0xff]
  %v1648 = vld [vmem:[%s3 + $0x150] sm:$0xff]
  %v1649 = vld [vmem:[%s3 + $0x158] sm:$0xff]
  %v1650 = vld [vmem:[%s3 + $0x160] sm:$0xff]
  %v1651 = vld [vmem:[%s3 + $0x168] sm:$0xff]
  %v1652 = vld [vmem:[%s3 + $0x170] sm:$0xff]
  %v1653 = vld [vmem:[%s3 + $0x178] sm:$0xff]
  %v1654 = vld [vmem:[%s3 + $0x180] sm:$0xff]
  %v1655 = vld [vmem:[%s3 + $0x188] sm:$0xff]
  %v1656 = vld [vmem:[%s3 + $0x190] sm:$0xff]
  %v1657 = vld [vmem:[%s3 + $0x198] sm:$0xff]
  %v1658 = vld [vmem:[%s3 + $0x1a0] sm:$0xff]
  %v1659 = vld [vmem:[%s3 + $0x1a8] sm:$0xff]
  %v1660 = vld [vmem:[%s3 + $0x1b0] sm:$0xff]
  %v1661 = vld [vmem:[%s3 + $0x1b8] sm:$0xff]
  %v1662 = vld [vmem:[%s3 + $0x1c0] sm:$0xff]
  %v1663 = vld [vmem:[%s3 + $0x1c8] sm:$0xff]
  %v1664 = vld [vmem:[%s3 + $0x1d0] sm:$0xff]
  %v1665 = vld [vmem:[%s3 + $0x1d8] sm:$0xff]
  %v1666 = vld [vmem:[%s3 + $0x1e0] sm:$0xff]
  %v1667 = vld [vmem:[%s3 + $0x1e8] sm:$0xff]
  %v1668 = vld [vmem:[%s3 + $0x1f0] sm:$0xff]
  %v1669 = vld [vmem:[%s3 + $0x1f8] sm:$0xff]
  %v1670 = vld [vmem:[%s4] sm:$0x3]
  %v1672 = vlaneseq
  %v1673 = vshrl.u32 %v1672, 7
  %v1674 = vsub.s32 0, %v1673
  %v1675 = vrot.slane %v1670, %v1674
  %v1676 = vlaneseq
  %v1677 = vshrl.u32 %v1676, 7
  %v1678 = vsub.s32 1, %v1677
  %v1679 = vrot.slane %v1670, %v1678
  %v1746 = vunpack.c.l.b16 %v1606
  %v1747 = vunpack.c.h.b16 %v1606
  %v1748 = vunpack.c.l.b16 %v1607
  %v1749 = vunpack.c.h.b16 %v1607
  %v1750 = vunpack.c.l.b16 %v1608
  %v1751 = vunpack.c.h.b16 %v1608
  %v1752 = vunpack.c.l.b16 %v1609
  %v1753 = vunpack.c.h.b16 %v1609
  %v1754 = vunpack.c.l.b16 %v1610
  %v1755 = vunpack.c.h.b16 %v1610
  %v1756 = vunpack.c.l.b16 %v1611
  %v1757 = vunpack.c.h.b16 %v1611
  %v1758 = vunpack.c.l.b16 %v1612
  %v1759 = vunpack.c.h.b16 %v1612
  %v1760 = vunpack.c.l.b16 %v1613
  %v1761 = vunpack.c.h.b16 %v1613
  %v1762 = vunpack.c.l.b16 %v1614
  %v1763 = vunpack.c.h.b16 %v1614
  %v1764 = vunpack.c.l.b16 %v1615
  %v1765 = vunpack.c.h.b16 %v1615
  %v1766 = vunpack.c.l.b16 %v1616
  %v1767 = vunpack.c.h.b16 %v1616
  %v1768 = vunpack.c.l.b16 %v1617
  %v1769 = vunpack.c.h.b16 %v1617
  %v1770 = vunpack.c.l.b16 %v1618
  %v1771 = vunpack.c.h.b16 %v1618
  %v1772 = vunpack.c.l.b16 %v1619
  %v1773 = vunpack.c.h.b16 %v1619
  %v1774 = vunpack.c.l.b16 %v1620
  %v1775 = vunpack.c.h.b16 %v1620
  %v1776 = vunpack.c.l.b16 %v1621
  %v1777 = vunpack.c.h.b16 %v1621
  %v1778 = vunpack.c.l.b16 %v1622
  %v1779 = vunpack.c.h.b16 %v1622
  %v1780 = vunpack.c.l.b16 %v1623
  %v1781 = vunpack.c.h.b16 %v1623
  %v1782 = vunpack.c.l.b16 %v1624
  %v1783 = vunpack.c.h.b16 %v1624
  %v1784 = vunpack.c.l.b16 %v1625
  %v1785 = vunpack.c.h.b16 %v1625
  %v1786 = vunpack.c.l.b16 %v1626
  %v1787 = vunpack.c.h.b16 %v1626
  %v1788 = vunpack.c.l.b16 %v1627
  %v1789 = vunpack.c.h.b16 %v1627
  %v1790 = vunpack.c.l.b16 %v1628
  %v1791 = vunpack.c.h.b16 %v1628
  %v1792 = vunpack.c.l.b16 %v1629
  %v1793 = vunpack.c.h.b16 %v1629
  %v1794 = vunpack.c.l.b16 %v1630
  %v1795 = vunpack.c.h.b16 %v1630
  %v1796 = vunpack.c.l.b16 %v1631
  %v1797 = vunpack.c.h.b16 %v1631
  %v1798 = vunpack.c.l.b16 %v1632
  %v1799 = vunpack.c.h.b16 %v1632
  %v1800 = vunpack.c.l.b16 %v1633
  %v1801 = vunpack.c.h.b16 %v1633
  %v1802 = vunpack.c.l.b16 %v1634
  %v1803 = vunpack.c.h.b16 %v1634
  %v1804 = vunpack.c.l.b16 %v1635
  %v1805 = vunpack.c.h.b16 %v1635
  %v1806 = vunpack.c.l.b16 %v1636
  %v1807 = vunpack.c.h.b16 %v1636
  %v1808 = vunpack.c.l.b16 %v1637
  %v1809 = vunpack.c.h.b16 %v1637
  %v1810 = vunpack.c.l.b16 %v1638
  %v1811 = vunpack.c.h.b16 %v1638
  %v1812 = vunpack.c.l.b16 %v1639
  %v1813 = vunpack.c.h.b16 %v1639
  %v1814 = vunpack.c.l.b16 %v1640
  %v1815 = vunpack.c.h.b16 %v1640
  %v1816 = vunpack.c.l.b16 %v1641
  %v1817 = vunpack.c.h.b16 %v1641
  %v1818 = vunpack.c.l.b16 %v1642
  %v1819 = vunpack.c.h.b16 %v1642
  %v1820 = vunpack.c.l.b16 %v1643
  %v1821 = vunpack.c.h.b16 %v1643
  %v1822 = vunpack.c.l.b16 %v1644
  %v1823 = vunpack.c.h.b16 %v1644
  %v1824 = vunpack.c.l.b16 %v1645
  %v1825 = vunpack.c.h.b16 %v1645
  %v1826 = vunpack.c.l.b16 %v1646
  %v1827 = vunpack.c.h.b16 %v1646
  %v1828 = vunpack.c.l.b16 %v1647
  %v1829 = vunpack.c.h.b16 %v1647
  %v1830 = vunpack.c.l.b16 %v1648
  %v1831 = vunpack.c.h.b16 %v1648
  %v1832 = vunpack.c.l.b16 %v1649
  %v1833 = vunpack.c.h.b16 %v1649
  %v1834 = vunpack.c.l.b16 %v1650
  %v1835 = vunpack.c.h.b16 %v1650
  %v1836 = vunpack.c.l.b16 %v1651
  %v1837 = vunpack.c.h.b16 %v1651
  %v1838 = vunpack.c.l.b16 %v1652
  %v1839 = vunpack.c.h.b16 %v1652
  %v1840 = vunpack.c.l.b16 %v1653
  %v1841 = vunpack.c.h.b16 %v1653
  %v1842 = vunpack.c.l.b16 %v1654
  %v1843 = vunpack.c.h.b16 %v1654
  %v1844 = vunpack.c.l.b16 %v1655
  %v1845 = vunpack.c.h.b16 %v1655
  %v1846 = vunpack.c.l.b16 %v1656
  %v1847 = vunpack.c.h.b16 %v1656
  %v1848 = vunpack.c.l.b16 %v1657
  %v1849 = vunpack.c.h.b16 %v1657
  %v1850 = vunpack.c.l.b16 %v1658
  %v1851 = vunpack.c.h.b16 %v1658
  %v1852 = vunpack.c.l.b16 %v1659
  %v1853 = vunpack.c.h.b16 %v1659
  %v1854 = vunpack.c.l.b16 %v1660
  %v1855 = vunpack.c.h.b16 %v1660
  %v1856 = vunpack.c.l.b16 %v1661
  %v1857 = vunpack.c.h.b16 %v1661
  %v1858 = vunpack.c.l.b16 %v1662
  %v1859 = vunpack.c.h.b16 %v1662
  %v1860 = vunpack.c.l.b16 %v1663
  %v1861 = vunpack.c.h.b16 %v1663
  %v1862 = vunpack.c.l.b16 %v1664
  %v1863 = vunpack.c.h.b16 %v1664
  %v1864 = vunpack.c.l.b16 %v1665
  %v1865 = vunpack.c.h.b16 %v1665
  %v1866 = vunpack.c.l.b16 %v1666
  %v1867 = vunpack.c.h.b16 %v1666
  %v1868 = vunpack.c.l.b16 %v1667
  %v1869 = vunpack.c.h.b16 %v1667
  %v1870 = vunpack.c.l.b16 %v1668
  %v1871 = vunpack.c.h.b16 %v1668
  %v1872 = vunpack.c.l.b16 %v1669
  %v1873 = vunpack.c.h.b16 %v1669
  %v1874 = vpack.c.b16 %v1748, %v1746
  %v1875 = vpack.c.b16 %v1749, %v1747
  %v1876 = vpack.c.b16 %v1752, %v1750
  %v1877 = vpack.c.b16 %v1753, %v1751
  %v1878 = vpack.c.b16 %v1756, %v1754
  %v1879 = vpack.c.b16 %v1757, %v1755
  %v1880 = vpack.c.b16 %v1760, %v1758
  %v1881 = vpack.c.b16 %v1761, %v1759
  %v1882 = vpack.c.b16 %v1764, %v1762
  %v1883 = vpack.c.b16 %v1765, %v1763
  %v1884 = vpack.c.b16 %v1768, %v1766
  %v1885 = vpack.c.b16 %v1769, %v1767
  %v1886 = vpack.c.b16 %v1772, %v1770
  %v1887 = vpack.c.b16 %v1773, %v1771
  %v1888 = vpack.c.b16 %v1776, %v1774
  %v1889 = vpack.c.b16 %v1777, %v1775
  %v1890 = vpack.c.b16 %v1780, %v1778
  %v1891 = vpack.c.b16 %v1781, %v1779
  %v1892 = vpack.c.b16 %v1784, %v1782
  %v1893 = vpack.c.b16 %v1785, %v1783
  %v1894 = vpack.c.b16 %v1788, %v1786
  %v1895 = vpack.c.b16 %v1789, %v1787
  %v1896 = vpack.c.b16 %v1792, %v1790
  %v1897 = vpack.c.b16 %v1793, %v1791
  %v1898 = vpack.c.b16 %v1796, %v1794
  %v1899 = vpack.c.b16 %v1797, %v1795
  %v1900 = vpack.c.b16 %v1800, %v1798
  %v1901 = vpack.c.b16 %v1801, %v1799
  %v1902 = vpack.c.b16 %v1804, %v1802
  %v1903 = vpack.c.b16 %v1805, %v1803
  %v1904 = vpack.c.b16 %v1808, %v1806
  %v1905 = vpack.c.b16 %v1809, %v1807
  %v1906 = vpack.c.b16 %v1812, %v1810
  %v1907 = vpack.c.b16 %v1813, %v1811
  %v1908 = vpack.c.b16 %v1816, %v1814
  %v1909 = vpack.c.b16 %v1817, %v1815
  %v1910 = vpack.c.b16 %v1820, %v1818
  %v1911 = vpack.c.b16 %v1821, %v1819
  %v1912 = vpack.c.b16 %v1824, %v1822
  %v1913 = vpack.c.b16 %v1825, %v1823
  %v1914 = vpack.c.b16 %v1828, %v1826
  %v1915 = vpack.c.b16 %v1829, %v1827
  %v1916 = vpack.c.b16 %v1832, %v1830
  %v1917 = vpack.c.b16 %v1833, %v1831
  %v1918 = vpack.c.b16 %v1836, %v1834
  %v1919 = vpack.c.b16 %v1837, %v1835
  %v1920 = vpack.c.b16 %v1840, %v1838
  %v1921 = vpack.c.b16 %v1841, %v1839
  %v1922 = vpack.c.b16 %v1844, %v1842
  %v1923 = vpack.c.b16 %v1845, %v1843
  %v1924 = vpack.c.b16 %v1848, %v1846
  %v1925 = vpack.c.b16 %v1849, %v1847
  %v1926 = vpack.c.b16 %v1852, %v1850
  %v1927 = vpack.c.b16 %v1853, %v1851
  %v1928 = vpack.c.b16 %v1856, %v1854
  %v1929 = vpack.c.b16 %v1857, %v1855
  %v1930 = vpack.c.b16 %v1860, %v1858
  %v1931 = vpack.c.b16 %v1861, %v1859
  %v1932 = vpack.c.b16 %v1864, %v1862
  %v1933 = vpack.c.b16 %v1865, %v1863
  %v1934 = vpack.c.b16 %v1868, %v1866
  %v1935 = vpack.c.b16 %v1869, %v1867
  %v1936 = vpack.c.b16 %v1872, %v1870
  %v1937 = vpack.c.b16 %v1873, %v1871
  %2002 = vmatprep.subr.bf16.mxu0 %v1875
  %2003 = vmatpush1.bf16.msra.mxu0 %v1874
  %2004 = vmatprep.subr.bf16.mxu0 %v1877
  %2005 = vmatpush1.bf16.msra.mxu0 %v1876
  %2006 = vmatprep.subr.bf16.mxu0 %v1879
  %2007 = vmatpush1.bf16.msra.mxu0 %v1878
  %2008 = vmatprep.subr.bf16.mxu0 %v1881
  %2009 = vmatpush1.bf16.msra.mxu0 %v1880
  %2010 = vmatprep.subr.bf16.mxu0 %v1883
  %2011 = vmatpush1.bf16.msra.mxu0 %v1882
  %2012 = vmatprep.subr.bf16.mxu0 %v1885
  %2013 = vmatpush1.bf16.msra.mxu0 %v1884
  %2014 = vmatprep.subr.bf16.mxu0 %v1887
  %2015 = vmatpush1.bf16.msra.mxu0 %v1886
  %2016 = vmatprep.subr.bf16.mxu0 %v1889
  %2017 = vmatpush1.bf16.msra.mxu0 %v1888
  %2018 = vmatprep.subr.bf16.mxu0 %v1891
  %2019 = vmatpush1.bf16.msra.mxu0 %v1890
  %2020 = vmatprep.subr.bf16.mxu0 %v1893
  %2021 = vmatpush1.bf16.msra.mxu0 %v1892
  %2022 = vmatprep.subr.bf16.mxu0 %v1895
  %2023 = vmatpush1.bf16.msra.mxu0 %v1894
  %2024 = vmatprep.subr.bf16.mxu0 %v1897
  %2025 = vmatpush1.bf16.msra.mxu0 %v1896
  %2026 = vmatprep.subr.bf16.mxu0 %v1899
  %2027 = vmatpush1.bf16.msra.mxu0 %v1898
  %2028 = vmatprep.subr.bf16.mxu0 %v1901
  %2029 = vmatpush1.bf16.msra.mxu0 %v1900
  %2030 = vmatprep.subr.bf16.mxu0 %v1903
  %2031 = vmatpush1.bf16.msra.mxu0 %v1902
  %2032 = vmatprep.subr.bf16.mxu0 %v1905
  %2033 = vmatpush1.bf16.msra.mxu0 %v1904
  %2034 = vmatprep.mubr.bf16.mxu0 %v1603
  %2035 = vmatmul.mubr.bf16.gmra.mrb[0].mxu0 %v1602
  %v2036 = vpop.f32.mrb[0].mxu0
  %v2037 = vadd.f32 %v1675, %v2036
  %v2038 = vpop.f32.mrb[0].mxu0
  %v2039 = vadd.f32 %v1679, %v2038
  %v2040 = vpop.f32.mrb[0].mxu0
  %v2041 = vadd.f32 %v1675, %v2040
  %v2042 = vpop.f32.mrb[0].mxu0
  %v2043 = vadd.f32 %v1679, %v2042
  %2044 = vdwg.mxu0
  %2045 = vmatprep.subr.bf16.mxu0 %v1907
  %2046 = vmatpush1.bf16.msra.mxu0 %v1906
  %2047 = vmatprep.subr.bf16.mxu0 %v1909
  %2048 = vmatpush1.bf16.msra.mxu0 %v1908
  %2049 = vmatprep.subr.bf16.mxu0 %v1911
  %2050 = vmatpush1.bf16.msra.mxu0 %v1910
  %2051 = vmatprep.subr.bf16.mxu0 %v1913
  %2052 = vmatpush1.bf16.msra.mxu0 %v1912
  %2053 = vmatprep.subr.bf16.mxu0 %v1915
  %2054 = vmatpush1.bf16.msra.mxu0 %v1914
  %2055 = vmatprep.subr.bf16.mxu0 %v1917
  %2056 = vmatpush1.bf16.msra.mxu0 %v1916
  %2057 = vmatprep.subr.bf16.mxu0 %v1919
  %2058 = vmatpush1.bf16.msra.mxu0 %v1918
  %2059 = vmatprep.subr.bf16.mxu0 %v1921
  %2060 = vmatpush1.bf16.msra.mxu0 %v1920
  %2061 = vmatprep.subr.bf16.mxu0 %v1923
  %2062 = vmatpush1.bf16.msra.mxu0 %v1922
  %2063 = vmatprep.subr.bf16.mxu0 %v1925
  %2064 = vmatpush1.bf16.msra.mxu0 %v1924
  %2065 = vmatprep.subr.bf16.mxu0 %v1927
  %2066 = vmatpush1.bf16.msra.mxu0 %v1926
  %2067 = vmatprep.subr.bf16.mxu0 %v1929
  %2068 = vmatpush1.bf16.msra.mxu0 %v1928
  %2069 = vmatprep.subr.bf16.mxu0 %v1931
  %2070 = vmatpush1.bf16.msra.mxu0 %v1930
  %2071 = vmatprep.subr.bf16.mxu0 %v1933
  %2072 = vmatpush1.bf16.msra.mxu0 %v1932
  %2073 = vmatprep.subr.bf16.mxu0 %v1935
  %2074 = vmatpush1.bf16.msra.mxu0 %v1934
  %2075 = vmatprep.subr.bf16.mxu0 %v1937
  %2076 = vmatpush1.bf16.msra.mxu0 %v1936
  %2077 = vmatprep.mubr.bf16.mxu0 %v1605
  %2078 = vmatmul.mubr.bf16.gmra.mrb[0].mxu0 %v1604
  %v2079 = vpop.f32.mrb[0].mxu0
  %v2080 = vadd.f32 %v2037, %v2079
  %v2081 = vpop.f32.mrb[0].mxu0
  %v2082 = vadd.f32 %v2039, %v2081
  %v2083 = vpop.f32.mrb[0].mxu0
  %v2084 = vadd.f32 %v2041, %v2083
  %v2085 = vpop.f32.mrb[0].mxu0
  %v2086 = vadd.f32 %v2043, %v2085
  %2087 = vdwg.mxu0
  %v2088 = vmax.f32 %v2080, 0.0
  %v2089 = vmax.f32 %v2082, 0.0
  %v2090 = vmax.f32 %v2084, 0.0
  %v2091 = vmax.f32 %v2086, 0.0
  %v2092 = vpack.c.bf16 %v2090, %v2088
  %v2093 = vpack.c.bf16 %v2091, %v2089
  %v2094 = vld [vmem:[%s5] sm:$0xf]
  %v2095 = vld [vmem:[%s5 + $0x4] sm:$0xf]
  %v2096 = vld [vmem:[%s5 + $0x8] sm:$0xf]
  %v2097 = vld [vmem:[%s5 + $0xc] sm:$0xf]
  %v2098 = vld [vmem:[%s5 + $0x10] sm:$0xf]
  %v2099 = vld [vmem:[%s5 + $0x14] sm:$0xf]
  %v2100 = vld [vmem:[%s5 + $0x18] sm:$0xf]
  %v2101 = vld [vmem:[%s5 + $0x1c] sm:$0xf]
  %v2102 = vld [vmem:[%s5 + $0x20] sm:$0xf]
  %v2103 = vld [vmem:[%s5 + $0x24] sm:$0xf]
  %v2104 = vld [vmem:[%s5 + $0x28] sm:$0xf]
  %v2105 = vld [vmem:[%s5 + $0x2c] sm:$0xf]
  %v2106 = vld [vmem:[%s5 + $0x30] sm:$0xf]
  %v2107 = vld [vmem:[%s5 + $0x34] sm:$0xf]
  %v2108 = vld [vmem:[%s5 + $0x38] sm:$0xf]
  %v2109 = vld [vmem:[%s5 + $0x3c] sm:$0xf]
  %v2110 = vld [vmem:[%s5 + $0x40] sm:$0xf]
  %v2111 = vld [vmem:[%s5 + $0x44] sm:$0xf]
  %v2112 = vld [vmem:[%s5 + $0x48] sm:$0xf]
  %v2113 = vld [vmem:[%s5 + $0x4c] sm:$0xf]
  %v2114 = vld [vmem:[%s5 + $0x50] sm:$0xf]
  %v2115 = vld [vmem:[%s5 + $0x54] sm:$0xf]
  %v2116 = vld [vmem:[%s5 + $0x58] sm:$0xf]
  %v2117 = vld [vmem:[%s5 + $0x5c] sm:$0xf]
  %v2118 = vld [vmem:[%s5 + $0x60] sm:$0xf]
  %v2119 = vld [vmem:[%s5 + $0x64] sm:$0xf]
  %v2120 = vld [vmem:[%s5 + $0x68] sm:$0xf]
  %v2121 = vld [vmem:[%s5 + $0x6c] sm:$0xf]
  %v2122 = vld [vmem:[%s5 + $0x70] sm:$0xf]
  %v2123 = vld [vmem:[%s5 + $0x74] sm:$0xf]
  %v2124 = vld [vmem:[%s5 + $0x78] sm:$0xf]
  %v2125 = vld [vmem:[%s5 + $0x7c] sm:$0xf]
  %v2126 = vld [vmem:[%s6] sm:$0x1]
  %v2128 = vlaneseq
  %v2129 = vshrl.u32 %v2128, 7
  %v2130 = vsub.s32 0, %v2129
  %v2131 = vrot.slane %v2126, %v2130
  %v2165 = vunpack.c.l.b16 %v2094
  %v2166 = vunpack.c.l.b16 %v2095
  %v2167 = vunpack.c.l.b16 %v2096
  %v2168 = vunpack.c.l.b16 %v2097
  %v2169 = vunpack.c.l.b16 %v2098
  %v2170 = vunpack.c.l.b16 %v2099
  %v2171 = vunpack.c.l.b16 %v2100
  %v2172 = vunpack.c.l.b16 %v2101
  %v2173 = vunpack.c.l.b16 %v2102
  %v2174 = vunpack.c.l.b16 %v2103
  %v2175 = vunpack.c.l.b16 %v2104
  %v2176 = vunpack.c.l.b16 %v2105
  %v2177 = vunpack.c.l.b16 %v2106
  %v2178 = vunpack.c.l.b16 %v2107
  %v2179 = vunpack.c.l.b16 %v2108
  %v2180 = vunpack.c.l.b16 %v2109
  %v2181 = vunpack.c.l.b16 %v2110
  %v2182 = vunpack.c.l.b16 %v2111
  %v2183 = vunpack.c.l.b16 %v2112
  %v2184 = vunpack.c.l.b16 %v2113
  %v2185 = vunpack.c.l.b16 %v2114
  %v2186 = vunpack.c.l.b16 %v2115
  %v2187 = vunpack.c.l.b16 %v2116
  %v2188 = vunpack.c.l.b16 %v2117
  %v2189 = vunpack.c.l.b16 %v2118
  %v2190 = vunpack.c.l.b16 %v2119
  %v2191 = vunpack.c.l.b16 %v2120
  %v2192 = vunpack.c.l.b16 %v2121
  %v2193 = vunpack.c.l.b16 %v2122
  %v2194 = vunpack.c.l.b16 %v2123
  %v2195 = vunpack.c.l.b16 %v2124
  %v2196 = vunpack.c.l.b16 %v2125
  %v2197 = vpack.c.b16 %v2166, %v2165
  %v2198 = vpack.c.b16 %v2168, %v2167
  %v2199 = vpack.c.b16 %v2170, %v2169
  %v2200 = vpack.c.b16 %v2172, %v2171
  %v2201 = vpack.c.b16 %v2174, %v2173
  %v2202 = vpack.c.b16 %v2176, %v2175
  %v2203 = vpack.c.b16 %v2178, %v2177
  %v2204 = vpack.c.b16 %v2180, %v2179
  %v2205 = vpack.c.b16 %v2182, %v2181
  %v2206 = vpack.c.b16 %v2184, %v2183
  %v2207 = vpack.c.b16 %v2186, %v2185
  %v2208 = vpack.c.b16 %v2188, %v2187
  %v2209 = vpack.c.b16 %v2190, %v2189
  %v2210 = vpack.c.b16 %v2192, %v2191
  %v2211 = vpack.c.b16 %v2194, %v2193
  %v2212 = vpack.c.b16 %v2196, %v2195
  %2229 = vmatprep.subr.bf16.mxu0 0
  %2230 = vmatpush1.bf16.msra.mxu0 %v2197
  %2231 = vmatprep.subr.bf16.mxu0 0
  %2232 = vmatpush1.bf16.msra.mxu0 %v2198
  %2233 = vmatprep.subr.bf16.mxu0 0
  %2234 = vmatpush1.bf16.msra.mxu0 %v2199
  %2235 = vmatprep.subr.bf16.mxu0 0
  %2236 = vmatpush1.bf16.msra.mxu0 %v2200
  %2237 = vmatprep.subr.bf16.mxu0 0
  %2238 = vmatpush1.bf16.msra.mxu0 %v2201
  %2239 = vmatprep.subr.bf16.mxu0 0
  %2240 = vmatpush1.bf16.msra.mxu0 %v2202
  %2241 = vmatprep.subr.bf16.mxu0 0
  %2242 = vmatpush1.bf16.msra.mxu0 %v2203
  %2243 = vmatprep.subr.bf16.mxu0 0
  %2244 = vmatpush1.bf16.msra.mxu0 %v2204
  %2245 = vmatprep.subr.bf16.mxu0 0
  %2246 = vmatpush1.bf16.msra.mxu0 %v2205
  %2247 = vmatprep.subr.bf16.mxu0 0
  %2248 = vmatpush1.bf16.msra.mxu0 %v2206
  %2249 = vmatprep.subr.bf16.mxu0 0
  %2250 = vmatpush1.bf16.msra.mxu0 %v2207
  %2251 = vmatprep.subr.bf16.mxu0 0
  %2252 = vmatpush1.bf16.msra.mxu0 %v2208
  %2253 = vmatprep.subr.bf16.mxu0 0
  %2254 = vmatpush1.bf16.msra.mxu0 %v2209
  %2255 = vmatprep.subr.bf16.mxu0 0
  %2256 = vmatpush1.bf16.msra.mxu0 %v2210
  %2257 = vmatprep.subr.bf16.mxu0 0
  %2258 = vmatpush1.bf16.msra.mxu0 %v2211
  %2259 = vmatprep.subr.bf16.mxu0 0
  %2260 = vmatpush1.bf16.msra.mxu0 %v2212
  %2261 = vmatprep.mubr.bf16.mxu0 %v2093
  %2262 = vmatmul.mubr.bf16.gmra.mrb[0].mxu0 %v2092
  %v2263 = vpop.f32.mrb[0].mxu0
  %v2264 = vadd.f32 %v2131, %v2263
  %v2265 = vpop.f32.mrb[0].mxu0
  %v2266 = vpop.f32.mrb[0].mxu0
  %v2267 = vadd.f32 %v2131, %v2266
  %v2268 = vpop.f32.mrb[0].mxu0
  %2269 = vdwg.mxu0
  %v2270 = vpack.c.bf16 %v2267, %v2264
  %v2272 = vunpack.c.l.b16 %v2270
  %v2273 = vunpack.c.h.b16 %v2270
  %v2274 = vpack.c.b16 %v2272, %v2272
  %v2275 = vpack.c.b16 %v2273, %v2273
  %2278 = vst [vmem:[%s7] sm:$0xf] %v2274
  %2279 = vst [vmem:[%s7 + $0x4] sm:$0xf] %v2275
  // Predicated region
  $region30: #{fashion_mnist_nn.1} parent=0 // pred_check
    _
  $region31: #{fashion_mnist_nn.1} parent=0 // pred_check_branch
    %2281 = sbr.rel (0) target = $region33
  $region32: #{fashion_mnist_nn.1} parent=0 // pred_region
    _
  $region33: #{fashion_mnist_nn.1} parent=0 // pred_fallthru
    _
  // Predicated region
  $region34: #{fashion_mnist_nn.1} parent=0 // pred_check
    _
  $region35: #{fashion_mnist_nn.1} parent=0 // pred_check_branch
    %2283 = sbr.rel (0) target = $region37
  $region36: #{fashion_mnist_nn.1} parent=0 // pred_region
    _
  $region37: #{fashion_mnist_nn.1} parent=0 // pred_fallthru
    _

</llo_original>
